<compile_context>
chip_gen: v5e
topology: v5e:2x2
jax: 0.10.0
libtpu: 0.0.40
codegen_flags: <defaults>
</compile_context>

<pallas_src>
import functools

import jax
import jax.numpy as jnp
from jax import lax
from jax.experimental import pallas as pl
from jax.experimental.pallas import tpu as pltpu


# ----------------------------- sizing helpers --------------------------------

def _cdiv(a, b):
    return -(-a // b)


def _round_up(x, m):
    return ((x + m - 1) // m) * m


@functools.lru_cache(maxsize=None)
def _vmem_capacity_bytes():
    try:
        info = pltpu.get_tpu_info()
        cap = int(getattr(info, "vmem_capacity_bytes", 0) or 0)
        if cap > 0:
            return cap
    except Exception:
        pass
    return 128 * 1024 * 1024          # v5e/v6e default; v7x reports 64 MiB itself


def _conv_vmem_limit_bytes():
    # ~96 MiB on v5e/v6e (128 MiB physical), ~48 MiB on v7x (64 MiB physical):
    # leaves headroom for double-buffering + Mosaic internal scratch.
    return int(min(_vmem_capacity_bytes() * 3 // 4, 100 * 1024 * 1024))


def _pick_conv_row_tile(n, oh, owp, c, in_item, cdt_item, out_item, vmem_limit):
    """Largest output-row tile whose modeled per-step VMEM footprint fits."""
    budget = int(vmem_limit * 0.8)

    def footprint(toh):
        tp = toh * owp
        tap = tp * 9 * c * cdt_item                              # im2col scratch
        phases = 2 * (4 * toh + 2) * (owp + 1) * c * in_item     # 4 main + 2 halo, x2 buf
        out = 2 * tp * c * out_item                              # double-buffered out
        wts = 2 * 9 * c * c * cdt_item + 2 * 4 * c               # resident weights+bias
        return tap + phases + out + wts

    toh = 1
    for t in range(1, oh + 1):
        if footprint(t) <= budget:
            toh = t
        else:
            break
    # Megacore balance (v7x has 2 TCs): make sure the grid has >= 2 steps if possible.
    if n * _cdiv(oh, toh) < 2 and oh >= 2:
        toh = _cdiv(oh, 2)
    return toh


# ----------------------------- with_conv = True ------------------------------

def _conv_fused_kernel(ee_ref, eeh_ref, eo_ref, eoh_ref, oe_ref, oo_ref,
                       w_ref, b_ref, o_ref, tap_ref):
    # ee/eo  : (1, TOH, OWP+1, C)  even input rows of this row tile
    # eeh/eoh: (1, 1,   OWP+1, C)  halo even row (= first even row of the next tile)
    # oe/oo  : (1, TOH, OWP+1, C)  odd input rows (no halo needed)
    # w_ref  : (9C, C) fused weights,  b_ref: (1, C) f32
    # o_ref  : (1, 1, TP, C) with TP = TOH*OWP
    # tap_ref: (TP, 9C) VMEM scratch in the compute dtype
    _, toh, owp1, c = oe_ref.shape
    ow = owp1 - 1
    tp = toh * ow
    split = (toh - 1) * ow

    ee, eeh = ee_ref[0], eeh_ref[0]
    eo, eoh = eo_ref[0], eoh_ref[0]
    oe, oo = oe_ref[0], oo_ref[0]

    # Taps ordered t = kh*3 + kw, matching the (9C, C) fused weight layout.
    # OWP % 8 == 0 so every reshape below is a free sublane-aligned view.
    def put_full(t, tapv):
        tap_ref[:, t * c:(t + 1) * c] = tapv.reshape(tp, c)

    def put_split(t, main_fn, halo):
        if toh > 1:                                           # static (Python) branch
            tap_ref[0:split, t * c:(t + 1) * c] = main_fn().reshape(split, c)
        tap_ref[split:tp, t * c:(t + 1) * c] = halo.reshape(ow, c)

    put_full(0, ee[:, :ow]); put_full(1, eo[:, :ow]); put_full(2, ee[:, 1:])   # kh = 0
    put_full(3, oe[:, :ow]); put_full(4, oo[:, :ow]); put_full(5, oe[:, 1:])   # kh = 1
    put_split(6, lambda: ee[1:, :ow], eeh[:, :ow])                             # kh = 2
    put_split(7, lambda: eo[1:, :ow], eoh[:, :ow])
    put_split(8, lambda: ee[1:, 1:],  eeh[:, 1:])

    # One fused MXU contraction; f32 accumulation + f32 bias.
    acc = jnp.dot(tap_ref[...], w_ref[...], preferred_element_type=jnp.float32)
    o_ref[0, 0] = (acc + b_ref[...]).astype(o_ref.dtype)


@functools.partial(jax.jit,
                   static_argnames=("compute_dtype", "row_tile", "channels_last"))
def downsample_with_conv(x, weight_oihw, bias, *, compute_dtype=None,
                         row_tile=None, channels_last=False):
    """Conv2d(C, C, 3, stride=2, padding=1).

    channels_last=False: NCHW in / NCHW out (PyTorch layout).
    channels_last=True : NHWC in / NHWC out (skips wrapper transposes).
    compute_dtype=jnp.bfloat16: opt-in fast-MXU path (f32 accumulation) for f32 inputs.
    """
    if channels_last:
        n, h, w, c = x.shape
        x_nhwc = x
    else:
        n, c, h, w = x.shape
        x_nhwc = jnp.transpose(x, (0, 2, 3, 1))

    oh = (h - 1) // 2 + 1
    ow = (w - 1) // 2 + 1
    owp = _round_up(ow, 8)                    # free (TOH,OWP,C)->(TP,C) reshapes
    out_dt = x.dtype
    cdt = jnp.dtype(out_dt if compute_dtype is None else compute_dtype)

    vmem_limit = _conv_vmem_limit_bytes()
    if row_tile is None:
        toh = _pick_conv_row_tile(n, oh, owp, c, cdt.itemsize, cdt.itemsize,
                                  jnp.dtype(out_dt).itemsize, vmem_limit)
    else:
        toh = max(1, min(int(row_tile), oh))
    nt = _cdiv(oh, toh)
    ohp = nt * toh                            # ragged OH handled by zero padding
    tp = toh * owp

    # ---- layout plumbing (fuses under jit): pad + stride-2 phase split ----
    hp, wp = 2 * ohp + 2, 2 * owp + 2
    xp = jnp.pad(x_nhwc.astype(cdt),
                 ((0, 0), (1, hp - h - 1), (1, wp - w - 1), (0, 0)))
    ph = xp.reshape(n, ohp + 1, 2, owp + 1, 2, c)
    ee, eo = ph[:, :, 0, :, 0, :], ph[:, :, 0, :, 1, :]        # even padded rows
    oe, oo = ph[:, :, 1, :, 0, :], ph[:, :, 1, :, 1, :]        # odd  padded rows

    # w_fused[(kh*3+kw)*C + ci, co] = weight[co, ci, kh, kw]
    w_fused = jnp.transpose(weight_oihw, (2, 3, 1, 0)).reshape(9 * c, c).astype(cdt)
    b_fused = bias.reshape(1, c).astype(jnp.float32)

    spec_main = pl.BlockSpec((1, toh, owp + 1, c), lambda i, r: (i, r, 0, 0))
    spec_halo = pl.BlockSpec((1, 1, owp + 1, c),                # size-1 block => block
                             lambda i, r: (i, (r + 1) * toh, 0, 0))  # index == row index

    out = pl.pallas_call(
        _conv_fused_kernel,
        out_shape=jax.ShapeDtypeStruct((n, nt, tp, c), out_dt),
        grid=(n, nt),
        in_specs=[
            spec_main, spec_halo,                               # ee, ee halo row
            spec_main, spec_halo,                               # eo, eo halo row
            spec_main, spec_main,                               # oe, oo
            pl.BlockSpec((9 * c, c), lambda i, r: (0, 0)),      # weights (grid-resident)
            pl.BlockSpec((1, c), lambda i, r: (0, 0)),          # bias
        ],
        out_specs=pl.BlockSpec((1, 1, tp, c), lambda i, r: (i, r, 0, 0)),
        scratch_shapes=[pltpu.VMEM((tp, 9 * c), cdt)],
        compiler_params=pltpu.CompilerParams(
            dimension_semantics=("parallel", "parallel"),
            vmem_limit_bytes=vmem_limit,
        ),
    )(ee, ee, eo, eo, oe, oo, w_fused, b_fused)

    out = out.reshape(n, ohp, owp, c)[:, :oh, :ow, :]
    return out if channels_last else jnp.transpose(out, (0, 3, 1, 2))


# ----------------------------- with_conv = False -----------------------------

def _avgpool3d_kernel(x_ref, sh_ref, sw_ref, o_ref):
    # x_ref : (1, G, 2, H, W)   G channel pairs per grid step
    # sh_ref: (H2, H) f32, sw_ref: (W, W2) f32  (0/1 pair-sum matrices, grid-resident)
    # o_ref : (1, G, H2, W2)
    g = o_ref.shape[1]
    for gi in range(g):                                            # static unroll
        s = (x_ref[0, gi, 0] + x_ref[0, gi, 1]).astype(jnp.float32)        # (H, W)
        t = jnp.dot(sh_ref[...], s, preferred_element_type=jnp.float32)    # (H2, W)
        u = jnp.dot(t, sw_ref[...], preferred_element_type=jnp.float32)    # (H2, W2)
        o_ref[0, gi] = (u * 0.125).astype(o_ref.dtype)


def _pick_pair_group(c2, h, w, itemsize, budget=4 * 1024 * 1024):
    """Largest divisor of C2 (<= 8) whose double-buffered x block fits the budget."""
    best = 1
    for g in range(1, min(c2, 8) + 1):
        if c2 % g == 0 and 2 * (2 * g * h * w) * itemsize <= budget:
            best = g
    return best


@jax.jit
def downsample_avgpool3d(x_nchw):
    """F.avg_pool3d(x, 2, 2) on a 4-D NCHW input (pools C, H and W)."""
    n, c, h, w = x_nchw.shape
    c2, h2, w2 = c // 2, h // 2, w // 2
    g = _pick_pair_group(c2, h, w, jnp.dtype(x_nchw.dtype).itemsize)

    # (N, C, H, W) -> (N, C2, 2, H, W) is a free (metadata-only) reshape.
    xg = x_nchw[:, :2 * c2].reshape(n, c2, 2, h, w)

    # 0/1 pair-sum matrices (tiny, constant index_map -> VMEM resident).
    sh = (jnp.arange(h2)[:, None] == (jnp.arange(h)[None, :] // 2)).astype(jnp.float32)
    sw = ((jnp.arange(w)[:, None] // 2) == jnp.arange(w2)[None, :]).astype(jnp.float32)

    # TODO(synk): for W2 < 128 the (H2, W2) output stores are lane-masked; a flattened
    # (N, C2, H2*W2) output layout would be lane-dense but needs an in-kernel relayout.
    return pl.pallas_call(
        _avgpool3d_kernel,
        out_shape=jax.ShapeDtypeStruct((n, c2, h2, w2), x_nchw.dtype),
        grid=(n, c2 // g),
        in_specs=[
            pl.BlockSpec((1, g, 2, h, w), lambda i, j: (i, j, 0, 0, 0)),
            pl.BlockSpec((h2, h), lambda i, j: (0, 0)),
            pl.BlockSpec((w, w2), lambda i, j: (0, 0)),
        ],
        out_specs=pl.BlockSpec((1, g, h2, w2), lambda i, j: (i, j, 0, 0)),
        compiler_params=pltpu.CompilerParams(
            dimension_semantics=("parallel", "parallel"),
        ),
    )(xg, sh, sw)


# --------------------------------- module ------------------------------------

class DownsamplePallas:
    def __init__(self, in_channels, with_conv, key):
        self.with_conv = with_conv
        if with_conv:
            kw_key, kb_key = jax.random.split(key)
            fan_in = in_channels * 3 * 3
            bound = 1.0 / (fan_in ** 0.5)
            # deterministic synthetic init (matches nn.Conv2d parameter shapes)
            self.weight = jax.random.uniform(
                kw_key, (in_channels, in_channels, 3, 3),
                minval=-bound, maxval=bound, dtype=jnp.float32)
            self.bias = jax.random.uniform(
                kb_key, (in_channels,), minval=-bound, maxval=bound,
                dtype=jnp.float32)

    def __call__(self, x):
        if self.with_conv:
            return downsample_with_conv(x, self.weight, self.bias)
        return downsample_avgpool3d(x)


if __name__ == "__main__":
    key = jax.random.PRNGKey(0)
    k_x, k_p = jax.random.split(key)
    x = jax.random.normal(k_x, (2, 4, 16, 16), dtype=jnp.float32)   # NCHW

    # --- with_conv=True (strict f32 path) ---
    mod = DownsamplePallas(in_channels=4, with_conv=True, key=k_p)
    y = jax.block_until_ready(mod(x))
    y_ref = lax.conv_general_dilated(
        x, mod.weight, window_strides=(2, 2), padding=((1, 1), (1, 1)),
        dimension_numbers=("NCHW", "OIHW", "NCHW")) + mod.bias.reshape(1, -1, 1, 1)
    assert y.shape == (2, 4, 8, 8)
    assert bool(jnp.allclose(y, y_ref, atol=1e-5, rtol=1e-5))

    # --- multi-row-tile path (exercises halo BlockSpec, grid=(2, 4)) ---
    y_t = jax.block_until_ready(
        downsample_with_conv(x, mod.weight, mod.bias, row_tile=2))
    assert bool(jnp.allclose(y_t, y_ref, atol=1e-5, rtol=1e-5))

    # --- opt-in bf16 fast-MXU path for f32 inputs (f32 accumulation) ---
    y_bf = jax.block_until_ready(
        downsample_with_conv(x, mod.weight, mod.bias, compute_dtype=jnp.bfloat16))
    assert bool(jnp.allclose(y_bf, y_ref, atol=5e-2, rtol=5e-2))

    # --- channels_last path (no NCHW<->NHWC wrapper transposes) ---
    y_cl = jax.block_until_ready(
        downsample_with_conv(jnp.transpose(x, (0, 2, 3, 1)), mod.weight, mod.bias,
                             channels_last=True))
    assert bool(jnp.allclose(jnp.transpose(y_cl, (0, 3, 1, 2)), y_ref,
                             atol=1e-5, rtol=1e-5))

    # --- odd H/W + ragged row tile (exercises OW->8 padding and OH padding/crop) ---
    x_odd = jax.random.normal(k_x, (1, 4, 15, 13), dtype=jnp.float32)
    y_odd = jax.block_until_ready(
        downsample_with_conv(x_odd, mod.weight, mod.bias, row_tile=3))
    y_odd_ref = lax.conv_general_dilated(
        x_odd, mod.weight, window_strides=(2, 2), padding=((1, 1), (1, 1)),
        dimension_numbers=("NCHW", "OIHW", "NCHW")) + mod.bias.reshape(1, -1, 1, 1)
    assert y_odd.shape == y_odd_ref.shape
    assert bool(jnp.allclose(y_odd, y_odd_ref, atol=1e-5, rtol=1e-5))

    # --- with_conv=False path (avg_pool3d over C, H, W; grouped channel pairs) ---
    mod2 = DownsamplePallas(in_channels=4, with_conv=False, key=k_p)
    y2 = jax.block_until_ready(mod2(x))
    y2_ref = x.reshape(2, 2, 2, 8, 2, 8, 2).mean(axis=(2, 4, 6))
    assert y2.shape == (2, 2, 8, 8)
    assert bool(jnp.allclose(y2, y2_ref, atol=1e-5, rtol=1e-5))

    print("KERNEL_OK")
</pallas_src>

<mosaic_0001>
module attributes {stable_mosaic.version = 11 : i64} {
  func.func @_conv_fused_kernel(%arg0: i32, %arg1: i32, %arg2: memref<1x8x9x4xf32, #tpu.memory_space<vmem>>, %arg3: memref<1x1x9x4xf32, #tpu.memory_space<vmem>>, %arg4: memref<1x8x9x4xf32, #tpu.memory_space<vmem>>, %arg5: memref<1x1x9x4xf32, #tpu.memory_space<vmem>>, %arg6: memref<1x8x9x4xf32, #tpu.memory_space<vmem>>, %arg7: memref<1x8x9x4xf32, #tpu.memory_space<vmem>>, %arg8: memref<36x4xf32, #tpu.memory_space<vmem>>, %arg9: memref<1x4xf32, #tpu.memory_space<vmem>>, %arg10: memref<1x1x64x4xf32, #tpu.memory_space<vmem>>, %arg11: memref<64x36xf32, #tpu.memory_space<vmem>>) attributes {dimension_semantics = [#tpu.dimension_semantics<parallel>, #tpu.dimension_semantics<parallel>], iteration_bounds = array<i64: 2, 1>, scalar_prefetch = 0 : i64, scratch_operands = 1 : i64, tpu.core_type = #tpu.core_type<tc>, window_params = [{transform_indices = @transform_0, window_bounds = array<i64: 1, 8, 9, 4>}, {transform_indices = @transform_1, window_bounds = array<i64: 1, 1, 9, 4>}, {transform_indices = @transform_2, window_bounds = array<i64: 1, 8, 9, 4>}, {transform_indices = @transform_3, window_bounds = array<i64: 1, 1, 9, 4>}, {transform_indices = @transform_4, window_bounds = array<i64: 1, 8, 9, 4>}, {transform_indices = @transform_5, window_bounds = array<i64: 1, 8, 9, 4>}, {pipeline_mode = #tpu.pipeline_mode<synchronous>, transform_indices = @transform_6, window_bounds = array<i64: 36, 4>}, {pipeline_mode = #tpu.pipeline_mode<synchronous>, transform_indices = @transform_7, window_bounds = array<i64: 1, 4>}, {transform_indices = @transform_8, window_bounds = array<i64: 1, 1, 64, 4>}]} {
    %c0 = arith.constant 0 : index
    %c0_0 = arith.constant 0 : index
    %c0_1 = arith.constant 0 : index
    %c0_2 = arith.constant 0 : index
    %0 = vector.load %arg2[%c0, %c0_0, %c0_1, %c0_2] : memref<1x8x9x4xf32, #tpu.memory_space<vmem>>, vector<1x8x9x4xf32>
    %1 = vector.shape_cast %0 : vector<1x8x9x4xf32> to vector<8x9x4xf32>
    %c0_3 = arith.constant 0 : index
    %c0_4 = arith.constant 0 : index
    %c0_5 = arith.constant 0 : index
    %c0_6 = arith.constant 0 : index
    %2 = vector.load %arg3[%c0_3, %c0_4, %c0_5, %c0_6] : memref<1x1x9x4xf32, #tpu.memory_space<vmem>>, vector<1x1x9x4xf32>
    %3 = vector.shape_cast %2 : vector<1x1x9x4xf32> to vector<1x9x4xf32>
    %c0_7 = arith.constant 0 : index
    %c0_8 = arith.constant 0 : index
    %c0_9 = arith.constant 0 : index
    %c0_10 = arith.constant 0 : index
    %4 = vector.load %arg4[%c0_7, %c0_8, %c0_9, %c0_10] : memref<1x8x9x4xf32, #tpu.memory_space<vmem>>, vector<1x8x9x4xf32>
    %5 = vector.shape_cast %4 : vector<1x8x9x4xf32> to vector<8x9x4xf32>
    %c0_11 = arith.constant 0 : index
    %c0_12 = arith.constant 0 : index
    %c0_13 = arith.constant 0 : index
    %c0_14 = arith.constant 0 : index
    %6 = vector.load %arg5[%c0_11, %c0_12, %c0_13, %c0_14] : memref<1x1x9x4xf32, #tpu.memory_space<vmem>>, vector<1x1x9x4xf32>
    %7 = vector.shape_cast %6 : vector<1x1x9x4xf32> to vector<1x9x4xf32>
    %c0_15 = arith.constant 0 : index
    %c0_16 = arith.constant 0 : index
    %c0_17 = arith.constant 0 : index
    %c0_18 = arith.constant 0 : index
    %8 = vector.load %arg6[%c0_15, %c0_16, %c0_17, %c0_18] : memref<1x8x9x4xf32, #tpu.memory_space<vmem>>, vector<1x8x9x4xf32>
    %9 = vector.shape_cast %8 : vector<1x8x9x4xf32> to vector<8x9x4xf32>
    %c0_19 = arith.constant 0 : index
    %c0_20 = arith.constant 0 : index
    %c0_21 = arith.constant 0 : index
    %c0_22 = arith.constant 0 : index
    %10 = vector.load %arg7[%c0_19, %c0_20, %c0_21, %c0_22] : memref<1x8x9x4xf32, #tpu.memory_space<vmem>>, vector<1x8x9x4xf32>
    %11 = vector.shape_cast %10 : vector<1x8x9x4xf32> to vector<8x9x4xf32>
    %12 = vector.extract_strided_slice %1 {offsets = [0, 0, 0], sizes = [8, 8, 4], strides = [1, 1, 1]} : vector<8x9x4xf32> to vector<8x8x4xf32>
    %13 = vector.shape_cast %12 : vector<8x8x4xf32> to vector<64x4xf32>
    %c0_23 = arith.constant 0 : index
    %c0_24 = arith.constant 0 : index
    %14 = vector.load %arg11[%c0_23, %c0_24] : memref<64x36xf32, #tpu.memory_space<vmem>>, vector<64x4xf32>
    tpu.vector_store %arg11[%c0_23, %c0_24], %13 {strides = array<i32>} : memref<64x36xf32, #tpu.memory_space<vmem>>, vector<64x4xf32>,
    %15 = vector.extract_strided_slice %5 {offsets = [0, 0, 0], sizes = [8, 8, 4], strides = [1, 1, 1]} : vector<8x9x4xf32> to vector<8x8x4xf32>
    %16 = vector.shape_cast %15 : vector<8x8x4xf32> to vector<64x4xf32>
    %c0_25 = arith.constant 0 : index
    %c4 = arith.constant 4 : index
    %17 = vector.load %arg11[%c0_25, %c4] : memref<64x36xf32, #tpu.memory_space<vmem>>, vector<64x4xf32>
    tpu.vector_store %arg11[%c0_25, %c4], %16 {strides = array<i32>} : memref<64x36xf32, #tpu.memory_space<vmem>>, vector<64x4xf32>,
    %18 = vector.extract_strided_slice %1 {offsets = [0, 1, 0], sizes = [8, 8, 4], strides = [1, 1, 1]} : vector<8x9x4xf32> to vector<8x8x4xf32>
    %19 = vector.shape_cast %18 : vector<8x8x4xf32> to vector<64x4xf32>
    %c0_26 = arith.constant 0 : index
    %c8 = arith.constant 8 : index
    %20 = vector.load %arg11[%c0_26, %c8] : memref<64x36xf32, #tpu.memory_space<vmem>>, vector<64x4xf32>
    tpu.vector_store %arg11[%c0_26, %c8], %19 {strides = array<i32>} : memref<64x36xf32, #tpu.memory_space<vmem>>, vector<64x4xf32>,
    %21 = vector.extract_strided_slice %9 {offsets = [0, 0, 0], sizes = [8, 8, 4], strides = [1, 1, 1]} : vector<8x9x4xf32> to vector<8x8x4xf32>
    %22 = vector.shape_cast %21 : vector<8x8x4xf32> to vector<64x4xf32>
    %c0_27 = arith.constant 0 : index
    %c12 = arith.constant 12 : index
    %23 = vector.load %arg11[%c0_27, %c12] : memref<64x36xf32, #tpu.memory_space<vmem>>, vector<64x4xf32>
    tpu.vector_store %arg11[%c0_27, %c12], %22 {strides = array<i32>} : memref<64x36xf32, #tpu.memory_space<vmem>>, vector<64x4xf32>,
    %24 = vector.extract_strided_slice %11 {offsets = [0, 0, 0], sizes = [8, 8, 4], strides = [1, 1, 1]} : vector<8x9x4xf32> to vector<8x8x4xf32>
    %25 = vector.shape_cast %24 : vector<8x8x4xf32> to vector<64x4xf32>
    %c0_28 = arith.constant 0 : index
    %c16 = arith.constant 16 : index
    %26 = vector.load %arg11[%c0_28, %c16] : memref<64x36xf32, #tpu.memory_space<vmem>>, vector<64x4xf32>
    tpu.vector_store %arg11[%c0_28, %c16], %25 {strides = array<i32>} : memref<64x36xf32, #tpu.memory_space<vmem>>, vector<64x4xf32>,
    %27 = vector.extract_strided_slice %9 {offsets = [0, 1, 0], sizes = [8, 8, 4], strides = [1, 1, 1]} : vector<8x9x4xf32> to vector<8x8x4xf32>
    %28 = vector.shape_cast %27 : vector<8x8x4xf32> to vector<64x4xf32>
    %c0_29 = arith.constant 0 : index
    %c20 = arith.constant 20 : index
    %29 = vector.load %arg11[%c0_29, %c20] : memref<64x36xf32, #tpu.memory_space<vmem>>, vector<64x4xf32>
    tpu.vector_store %arg11[%c0_29, %c20], %28 {strides = array<i32>} : memref<64x36xf32, #tpu.memory_space<vmem>>, vector<64x4xf32>,
    %30 = vector.extract_strided_slice %3 {offsets = [0, 0, 0], sizes = [1, 8, 4], strides = [1, 1, 1]} : vector<1x9x4xf32> to vector<1x8x4xf32>
    %31 = vector.extract_strided_slice %1 {offsets = [1, 0, 0], sizes = [7, 8, 4], strides = [1, 1, 1]} : vector<8x9x4xf32> to vector<7x8x4xf32>
    %32 = vector.shape_cast %31 : vector<7x8x4xf32> to vector<56x4xf32>
    %c0_30 = arith.constant 0 : index
    %c24 = arith.constant 24 : index
    %33 = vector.load %arg11[%c0_30, %c24] : memref<64x36xf32, #tpu.memory_space<vmem>>, vector<56x4xf32>
    tpu.vector_store %arg11[%c0_30, %c24], %32 {strides = array<i32>} : memref<64x36xf32, #tpu.memory_space<vmem>>, vector<56x4xf32>,
    %34 = vector.shape_cast %30 : vector<1x8x4xf32> to vector<8x4xf32>
    %c56 = arith.constant 56 : index
    %c24_31 = arith.constant 24 : index
    %35 = vector.load %arg11[%c56, %c24_31] : memref<64x36xf32, #tpu.memory_space<vmem>>, vector<8x4xf32>
    tpu.vector_store %arg11[%c56, %c24_31], %34 {strides = array<i32>} : memref<64x36xf32, #tpu.memory_space<vmem>>, vector<8x4xf32>,
    %36 = vector.extract_strided_slice %7 {offsets = [0, 0, 0], sizes = [1, 8, 4], strides = [1, 1, 1]} : vector<1x9x4xf32> to vector<1x8x4xf32>
    %37 = vector.extract_strided_slice %5 {offsets = [1, 0, 0], sizes = [7, 8, 4], strides = [1, 1, 1]} : vector<8x9x4xf32> to vector<7x8x4xf32>
    %38 = vector.shape_cast %37 : vector<7x8x4xf32> to vector<56x4xf32>
    %c0_32 = arith.constant 0 : index
    %c28 = arith.constant 28 : index
    %39 = vector.load %arg11[%c0_32, %c28] : memref<64x36xf32, #tpu.memory_space<vmem>>, vector<56x4xf32>
    tpu.vector_store %arg11[%c0_32, %c28], %38 {strides = array<i32>} : memref<64x36xf32, #tpu.memory_space<vmem>>, vector<56x4xf32>,
    %40 = vector.shape_cast %36 : vector<1x8x4xf32> to vector<8x4xf32>
    %c56_33 = arith.constant 56 : index
    %c28_34 = arith.constant 28 : index
    %41 = vector.load %arg11[%c56_33, %c28_34] : memref<64x36xf32, #tpu.memory_space<vmem>>, vector<8x4xf32>
    tpu.vector_store %arg11[%c56_33, %c28_34], %40 {strides = array<i32>} : memref<64x36xf32, #tpu.memory_space<vmem>>, vector<8x4xf32>,
    %42 = vector.extract_strided_slice %3 {offsets = [0, 1, 0], sizes = [1, 8, 4], strides = [1, 1, 1]} : vector<1x9x4xf32> to vector<1x8x4xf32>
    %43 = vector.extract_strided_slice %1 {offsets = [1, 1, 0], sizes = [7, 8, 4], strides = [1, 1, 1]} : vector<8x9x4xf32> to vector<7x8x4xf32>
    %44 = vector.shape_cast %43 : vector<7x8x4xf32> to vector<56x4xf32>
    %c0_35 = arith.constant 0 : index
    %c32 = arith.constant 32 : index
    %45 = vector.load %arg11[%c0_35, %c32] : memref<64x36xf32, #tpu.memory_space<vmem>>, vector<56x4xf32>
    tpu.vector_store %arg11[%c0_35, %c32], %44 {strides = array<i32>} : memref<64x36xf32, #tpu.memory_space<vmem>>, vector<56x4xf32>,
    %46 = vector.shape_cast %42 : vector<1x8x4xf32> to vector<8x4xf32>
    %c56_36 = arith.constant 56 : index
    %c32_37 = arith.constant 32 : index
    %47 = vector.load %arg11[%c56_36, %c32_37] : memref<64x36xf32, #tpu.memory_space<vmem>>, vector<8x4xf32>
    tpu.vector_store %arg11[%c56_36, %c32_37], %46 {strides = array<i32>} : memref<64x36xf32, #tpu.memory_space<vmem>>, vector<8x4xf32>,
    %c0_38 = arith.constant 0 : index
    %c0_39 = arith.constant 0 : index
    %48 = vector.load %arg11[%c0_38, %c0_39] : memref<64x36xf32, #tpu.memory_space<vmem>>, vector<64x36xf32>
    %c0_40 = arith.constant 0 : index
    %c0_41 = arith.constant 0 : index
    %49 = vector.load %arg8[%c0_40, %c0_41] : memref<36x4xf32, #tpu.memory_space<vmem>>, vector<36x4xf32>
    %cst = arith.constant dense<0.000000e+00> : vector<64x4xf32>
    %50 = tpu.matmul %48, %49, %cst {dimension_numbers = #tpu.dot_dimension_numbers<[1], [0], [0], [1], [0, 0, 1, 1], [], []>} : vector<64x36xf32>, vector<36x4xf32>, vector<64x4xf32> -> vector<64x4xf32>
    %c0_42 = arith.constant 0 : index
    %c0_43 = arith.constant 0 : index
    %51 = vector.load %arg9[%c0_42, %c0_43] : memref<1x4xf32, #tpu.memory_space<vmem>>, vector<1x4xf32>
    %52 = vector.broadcast %51 : vector<1x4xf32> to vector<64x4xf32>
    %53 = arith.addf %50, %52 : vector<64x4xf32>
    %c0_44 = arith.constant 0 : index
    %c0_45 = arith.constant 0 : index
    %c0_46 = arith.constant 0 : index
    %c0_47 = arith.constant 0 : index
    %54 = vector.load %arg10[%c0_44, %c0_45, %c0_46, %c0_47] : memref<1x1x64x4xf32, #tpu.memory_space<vmem>>, vector<1x1x64x4xf32>
    %55 = vector.shape_cast %54 : vector<1x1x64x4xf32> to vector<64x4xf32>
    %56 = vector.shape_cast %53 : vector<64x4xf32> to vector<1x1x64x4xf32>
    tpu.vector_store %arg10[%c0_44, %c0_45, %c0_46, %c0_47], %56 {strides = array<i32>} : memref<1x1x64x4xf32, #tpu.memory_space<vmem>>, vector<1x1x64x4xf32>,
    return
  }
  func.func @transform_0(%arg0: i32, %arg1: i32) -> (i32, i32, i32, i32) {
    %c0_i32 = arith.constant 0 : i32
    %c0_i32_0 = arith.constant 0 : i32
    %c0_i32_1 = arith.constant 0 : i32
    return %arg0, %arg1, %c0_i32, %c0_i32_0 : i32, i32, i32, i32
  }
  func.func @transform_1(%arg0: i32, %arg1: i32) -> (i32, i32, i32, i32) {
    %c1_i32 = arith.constant 1 : i32
    %0 = arith.addi %arg1, %c1_i32 : i32
    %c8_i32 = arith.constant 8 : i32
    %1 = arith.muli %0, %c8_i32 : i32
    %c0_i32 = arith.constant 0 : i32
    %c0_i32_0 = arith.constant 0 : i32
    %c0_i32_1 = arith.constant 0 : i32
    return %arg0, %1, %c0_i32, %c0_i32_0 : i32, i32, i32, i32
  }
  func.func @transform_2(%arg0: i32, %arg1: i32) -> (i32, i32, i32, i32) {
    %c0_i32 = arith.constant 0 : i32
    %c0_i32_0 = arith.constant 0 : i32
    %c0_i32_1 = arith.constant 0 : i32
    return %arg0, %arg1, %c0_i32, %c0_i32_0 : i32, i32, i32, i32
  }
  func.func @transform_3(%arg0: i32, %arg1: i32) -> (i32, i32, i32, i32) {
    %c1_i32 = arith.constant 1 : i32
    %0 = arith.addi %arg1, %c1_i32 : i32
    %c8_i32 = arith.constant 8 : i32
    %1 = arith.muli %0, %c8_i32 : i32
    %c0_i32 = arith.constant 0 : i32
    %c0_i32_0 = arith.constant 0 : i32
    %c0_i32_1 = arith.constant 0 : i32
    return %arg0, %1, %c0_i32, %c0_i32_0 : i32, i32, i32, i32
  }
  func.func @transform_4(%arg0: i32, %arg1: i32) -> (i32, i32, i32, i32) {
    %c0_i32 = arith.constant 0 : i32
    %c0_i32_0 = arith.constant 0 : i32
    %c0_i32_1 = arith.constant 0 : i32
    return %arg0, %arg1, %c0_i32, %c0_i32_0 : i32, i32, i32, i32
  }
  func.func @transform_5(%arg0: i32, %arg1: i32) -> (i32, i32, i32, i32) {
    %c0_i32 = arith.constant 0 : i32
    %c0_i32_0 = arith.constant 0 : i32
    %c0_i32_1 = arith.constant 0 : i32
    return %arg0, %arg1, %c0_i32, %c0_i32_0 : i32, i32, i32, i32
  }
  func.func @transform_6(%arg0: i32, %arg1: i32) -> (i32, i32) {
    %c0_i32 = arith.constant 0 : i32
    %c0_i32_0 = arith.constant 0 : i32
    %c0_i32_1 = arith.constant 0 : i32
    return %c0_i32, %c0_i32_0 : i32, i32
  }
  func.func @transform_7(%arg0: i32, %arg1: i32) -> (i32, i32) {
    %c0_i32 = arith.constant 0 : i32
    %c0_i32_0 = arith.constant 0 : i32
    %c0_i32_1 = arith.constant 0 : i32
    return %c0_i32, %c0_i32_0 : i32, i32
  }
  func.func @transform_8(%arg0: i32, %arg1: i32) -> (i32, i32, i32, i32) {
    %c0_i32 = arith.constant 0 : i32
    %c0_i32_0 = arith.constant 0 : i32
    %c0_i32_1 = arith.constant 0 : i32
    return %arg0, %arg1, %c0_i32, %c0_i32_0 : i32, i32, i32, i32
  }
}

</mosaic_0001>

<llo_original>
// kernel: downsample_with_conv.1
$region0: #{downsample_with_conv.1}
  #allocation0 [shape = 'u32[]', space=smem, size = 0x4, offset = 0x4, fixed_abs, tag = 'smem constant byte address 0x4 - core index']
  #allocation1 [shape = 'u32[72,128]{1,0:T(1,128)}', space=vmem, size = 0x9000, scoped, tag = 'internal scratch']
  #allocation2 [shape = 'f32[64,36]{1,0:T(8,128)}', space=vmem, size = 0x8000, scoped, tag = 'scratch operand']
  %s0 = inlined_call_operand.vmem [shape: f32[2,9,9,4], index: 0, kind: input, shape index: {}, may-alias: {0,1}]
  %s1 = inlined_call_operand.vmem [shape: f32[2,9,9,4], index: 1, kind: input, shape index: {}, may-alias: {0,1}]
  %s2 = inlined_call_operand.vmem [shape: f32[2,9,9,4], index: 2, kind: input, shape index: {}, may-alias: {2,3}]
  %s3 = inlined_call_operand.vmem [shape: f32[2,9,9,4], index: 3, kind: input, shape index: {}, may-alias: {2,3}]
  %s4 = inlined_call_operand.vmem [shape: f32[2,9,9,4], index: 4, kind: input, shape index: {}]
  %s5 = inlined_call_operand.vmem [shape: f32[2,9,9,4], index: 5, kind: input, shape index: {}]
  %s6 = inlined_call_operand.vmem [shape: f32[36,4], index: 6, kind: input, shape index: {}]
  %s7 = inlined_call_operand.vmem [shape: f32[1,4], index: 7, kind: input, shape index: {}]
  %s8 = inlined_call_operand.vmem [shape: f32[2,1,64,4], index: 8, kind: output, shape index: {}]
  %s9 = sld [smem:[#allocation0]]
  $region65: #{downsample_with_conv.1} parent=0
    _
  %s11 = ssub.s32 1, %s9
  %s12 = scalar_select 0, %s11, %s9
  loop: start=0, step=1, limit=4
  $region2: #{downsample_with_conv.1} parent=0 // loop_pre_header
    _
  $region3: #{downsample_with_conv.1} parent=0 // loop_header
    %s14 = sphi 0, %s18
    %p15 = scmp.ge.s32.totalorder %s14, 4
    %s21 = sphi 0, %s33
    %s22 = sphi 0, %s29
    %s23 = sphi 0, %s21
    %s24 = sphi 0, %s22
    %s25 = sphi 0, %s23
    %s26 = sphi 0, %s24
    %s38 = sphi 0, %s40
    %s41 = sphi 0, %s38
    %s42 = sphi 0, %s41
    %s58 = sphi 0, %s42
    %s70 = sphi 0, %s72
    %s73 = sphi 0, %s70
    %s74 = sphi 0, %s73
    %s90 = sphi 0, %s74
    %s98 = sphi 0, %s100
    %s101 = sphi 0, %s98
    %s102 = sphi 0, %s101
    %s118 = sphi 0, %s102
    %s130 = sphi 0, %s132
    %s133 = sphi 0, %s130
    %s134 = sphi 0, %s133
    %s150 = sphi 0, %s134
    %s158 = sphi 0, %s160
    %s161 = sphi 0, %s158
    %s162 = sphi 0, %s161
    %s178 = sphi 0, %s162
    %s186 = sphi 0, %s188
    %s189 = sphi 0, %s186
    %s190 = sphi 0, %s189
    %s206 = sphi 0, %s190
    %s210 = sphi 0, %s210
    %s212 = sphi 0, %s210
    %s213 = sphi 0, %s212
    %s227 = sphi 0, %s213
    %s231 = sphi 0, %s231
    %s233 = sphi 0, %s231
    %s234 = sphi 0, %s233
    %s248 = sphi 0, %s234
    %s256 = sphi 0, %s258
    %s259 = sphi 0, %s256
    %s260 = sphi 0, %s259
    %s276 = sphi 0, %s260
  $region4: #{downsample_with_conv.1} parent=0 // loop_header_branch
    %17 = sbr.rel (%p15) target = $region8
  $region5: #{downsample_with_conv.1} parent=0 // loop_body
    %s19 = ssub.s32 %s14, 1
    %s20 = ssub.s32 %s14, 2
    %s27 = sadd.s32 1, %s22
    %p28 = scmp.ge.s32.totalorder %s27, 1
    %s29 = scalar_select %p28, 0, %s27
    %s30 = sadd.s32 1, %s21
    %s31 = scalar_select %p28, %s30, %s21
    %p32 = scmp.ge.s32.totalorder %s31, 2
    %s33 = scalar_select %p32, 0, %s31
    %s34 = ssub.s32 %s21, %s33
    %s35 = ssub.s32 %s22, %s29
    %s36 = sor.u32 %s34, %s35
    %p37 = scmp.eq.s32.totalorder %s36, 0
    %s39 = sadd.s32 %s38, 1
    %s40 = scalar_select %p37, %s38, %s39
    %p43 = pneg %p37
    %p44 = scmp.eq.s32.totalorder %s14, 1
    %p45 = por %p43, %p44
    %p46 = scmp.ne.s32.totalorder %s38, %s41
    %p47 = scmp.eq.s32.totalorder %s14, 0
    %p48 = por %p46, %p47
    %p49 = scmp.ne.s32.totalorder %s38, %s41
    %p50 = scmp.eq.s32.totalorder %s19, 1
    %p51 = por %p49, %p50
    %p52 = scmp.ne.s32.totalorder %s41, %s42
    %p53 = scmp.eq.s32.totalorder %s19, 0
    %p54 = por %p52, %p53
    %p55 = scmp.ne.s32.totalorder %s41, %s42
    %p56 = scmp.eq.s32.totalorder %s20, 1
    %p57 = por %p55, %p56
    %p59 = scmp.ne.s32.totalorder %s42, %s58
    %p60 = scmp.eq.s32.totalorder %s20, 0
    %p61 = por %p59, %p60
    %s62 = sadd.s32 %s22, 1
    %s63 = smul.u32 %s62, 8
    %s64 = sadd.s32 %s29, 1
    %s65 = smul.u32 %s64, 8
    %s66 = ssub.s32 %s21, %s33
    %s67 = ssub.s32 %s63, %s65
    %s68 = sor.u32 %s66, %s67
    %p69 = scmp.eq.s32.totalorder %s68, 0
    %s71 = sadd.s32 %s70, 1
    %s72 = scalar_select %p69, %s70, %s71
    %p75 = pneg %p69
    %p76 = scmp.eq.s32.totalorder %s14, 1
    %p77 = por %p75, %p76
    %p78 = scmp.ne.s32.totalorder %s70, %s73
    %p79 = scmp.eq.s32.totalorder %s14, 0
    %p80 = por %p78, %p79
    %p81 = scmp.ne.s32.totalorder %s70, %s73
    %p82 = scmp.eq.s32.totalorder %s19, 1
    %p83 = por %p81, %p82
    %p84 = scmp.ne.s32.totalorder %s73, %s74
    %p85 = scmp.eq.s32.totalorder %s19, 0
    %p86 = por %p84, %p85
    %p87 = scmp.ne.s32.totalorder %s73, %s74
    %p88 = scmp.eq.s32.totalorder %s20, 1
    %p89 = por %p87, %p88
    %p91 = scmp.ne.s32.totalorder %s74, %s90
    %p92 = scmp.eq.s32.totalorder %s20, 0
    %p93 = por %p91, %p92
    %s94 = ssub.s32 %s21, %s33
    %s95 = ssub.s32 %s22, %s29
    %s96 = sor.u32 %s94, %s95
    %p97 = scmp.eq.s32.totalorder %s96, 0
    %s99 = sadd.s32 %s98, 1
    %s100 = scalar_select %p97, %s98, %s99
    %p103 = pneg %p97
    %p104 = scmp.eq.s32.totalorder %s14, 1
    %p105 = por %p103, %p104
    %p106 = scmp.ne.s32.totalorder %s98, %s101
    %p107 = scmp.eq.s32.totalorder %s14, 0
    %p108 = por %p106, %p107
    %p109 = scmp.ne.s32.totalorder %s98, %s101
    %p110 = scmp.eq.s32.totalorder %s19, 1
    %p111 = por %p109, %p110
    %p112 = scmp.ne.s32.totalorder %s101, %s102
    %p113 = scmp.eq.s32.totalorder %s19, 0
    %p114 = por %p112, %p113
    %p115 = scmp.ne.s32.totalorder %s101, %s102
    %p116 = scmp.eq.s32.totalorder %s20, 1
    %p117 = por %p115, %p116
    %p119 = scmp.ne.s32.totalorder %s102, %s118
    %p120 = scmp.eq.s32.totalorder %s20, 0
    %p121 = por %p119, %p120
    %s122 = sadd.s32 %s22, 1
    %s123 = smul.u32 %s122, 8
    %s124 = sadd.s32 %s29, 1
    %s125 = smul.u32 %s124, 8
    %s126 = ssub.s32 %s21, %s33
    %s127 = ssub.s32 %s123, %s125
    %s128 = sor.u32 %s126, %s127
    %p129 = scmp.eq.s32.totalorder %s128, 0
    %s131 = sadd.s32 %s130, 1
    %s132 = scalar_select %p129, %s130, %s131
    %p135 = pneg %p129
    %p136 = scmp.eq.s32.totalorder %s14, 1
    %p137 = por %p135, %p136
    %p138 = scmp.ne.s32.totalorder %s130, %s133
    %p139 = scmp.eq.s32.totalorder %s14, 0
    %p140 = por %p138, %p139
    %p141 = scmp.ne.s32.totalorder %s130, %s133
    %p142 = scmp.eq.s32.totalorder %s19, 1
    %p143 = por %p141, %p142
    %p144 = scmp.ne.s32.totalorder %s133, %s134
    %p145 = scmp.eq.s32.totalorder %s19, 0
    %p146 = por %p144, %p145
    %p147 = scmp.ne.s32.totalorder %s133, %s134
    %p148 = scmp.eq.s32.totalorder %s20, 1
    %p149 = por %p147, %p148
    %p151 = scmp.ne.s32.totalorder %s134, %s150
    %p152 = scmp.eq.s32.totalorder %s20, 0
    %p153 = por %p151, %p152
    %s154 = ssub.s32 %s21, %s33
    %s155 = ssub.s32 %s22, %s29
    %s156 = sor.u32 %s154, %s155
    %p157 = scmp.eq.s32.totalorder %s156, 0
    %s159 = sadd.s32 %s158, 1
    %s160 = scalar_select %p157, %s158, %s159
    %p163 = pneg %p157
    %p164 = scmp.eq.s32.totalorder %s14, 1
    %p165 = por %p163, %p164
    %p166 = scmp.ne.s32.totalorder %s158, %s161
    %p167 = scmp.eq.s32.totalorder %s14, 0
    %p168 = por %p166, %p167
    %p169 = scmp.ne.s32.totalorder %s158, %s161
    %p170 = scmp.eq.s32.totalorder %s19, 1
    %p171 = por %p169, %p170
    %p172 = scmp.ne.s32.totalorder %s161, %s162
    %p173 = scmp.eq.s32.totalorder %s19, 0
    %p174 = por %p172, %p173
    %p175 = scmp.ne.s32.totalorder %s161, %s162
    %p176 = scmp.eq.s32.totalorder %s20, 1
    %p177 = por %p175, %p176
    %p179 = scmp.ne.s32.totalorder %s162, %s178
    %p180 = scmp.eq.s32.totalorder %s20, 0
    %p181 = por %p179, %p180
    %s182 = ssub.s32 %s21, %s33
    %s183 = ssub.s32 %s22, %s29
    %s184 = sor.u32 %s182, %s183
    %p185 = scmp.eq.s32.totalorder %s184, 0
    %s187 = sadd.s32 %s186, 1
    %s188 = scalar_select %p185, %s186, %s187
    %p191 = pneg %p185
    %p192 = scmp.eq.s32.totalorder %s14, 1
    %p193 = por %p191, %p192
    %p194 = scmp.ne.s32.totalorder %s186, %s189
    %p195 = scmp.eq.s32.totalorder %s14, 0
    %p196 = por %p194, %p195
    %p197 = scmp.ne.s32.totalorder %s186, %s189
    %p198 = scmp.eq.s32.totalorder %s19, 1
    %p199 = por %p197, %p198
    %p200 = scmp.ne.s32.totalorder %s189, %s190
    %p201 = scmp.eq.s32.totalorder %s19, 0
    %p202 = por %p200, %p201
    %p203 = scmp.ne.s32.totalorder %s189, %s190
    %p204 = scmp.eq.s32.totalorder %s20, 1
    %p205 = por %p203, %p204
    %p207 = scmp.ne.s32.totalorder %s190, %s206
    %p208 = scmp.eq.s32.totalorder %s20, 0
    %p209 = por %p207, %p208
    %s211 = sadd.s32 %s210, 1
    %p214 = scmp.eq.s32.totalorder %s14, 1
    %p215 = scmp.ne.s32.totalorder %s210, %s212
    %p216 = scmp.eq.s32.totalorder %s14, 0
    %p217 = por %p215, %p216
    %p218 = scmp.ne.s32.totalorder %s210, %s212
    %p219 = scmp.eq.s32.totalorder %s19, 1
    %p220 = por %p218, %p219
    %p221 = scmp.ne.s32.totalorder %s212, %s213
    %p222 = scmp.eq.s32.totalorder %s19, 0
    %p223 = por %p221, %p222
    %p224 = scmp.ne.s32.totalorder %s212, %s213
    %p225 = scmp.eq.s32.totalorder %s20, 1
    %p226 = por %p224, %p225
    %p228 = scmp.ne.s32.totalorder %s213, %s227
    %p229 = scmp.eq.s32.totalorder %s20, 0
    %p230 = por %p228, %p229
    %s232 = sadd.s32 %s231, 1
    %p235 = scmp.eq.s32.totalorder %s14, 1
    %p236 = scmp.ne.s32.totalorder %s231, %s233
    %p237 = scmp.eq.s32.totalorder %s14, 0
    %p238 = por %p236, %p237
    %p239 = scmp.ne.s32.totalorder %s231, %s233
    %p240 = scmp.eq.s32.totalorder %s19, 1
    %p241 = por %p239, %p240
    %p242 = scmp.ne.s32.totalorder %s233, %s234
    %p243 = scmp.eq.s32.totalorder %s19, 0
    %p244 = por %p242, %p243
    %p245 = scmp.ne.s32.totalorder %s233, %s234
    %p246 = scmp.eq.s32.totalorder %s20, 1
    %p247 = por %p245, %p246
    %p249 = scmp.ne.s32.totalorder %s234, %s248
    %p250 = scmp.eq.s32.totalorder %s20, 0
    %p251 = por %p249, %p250
    %s252 = ssub.s32 %s21, %s33
    %s253 = ssub.s32 %s22, %s29
    %s254 = sor.u32 %s252, %s253
    %p255 = scmp.eq.s32.totalorder %s254, 0
    %s257 = sadd.s32 %s256, 1
    %s258 = scalar_select %p255, %s256, %s257
    %p261 = pneg %p255
    %p262 = scmp.eq.s32.totalorder %s14, 1
    %p263 = por %p261, %p262
    %p264 = scmp.ne.s32.totalorder %s256, %s259
    %p265 = scmp.eq.s32.totalorder %s14, 0
    %p266 = por %p264, %p265
    %p267 = scmp.ne.s32.totalorder %s256, %s259
    %p268 = scmp.eq.s32.totalorder %s19, 1
    %p269 = por %p267, %p268
    %p270 = scmp.ne.s32.totalorder %s259, %s260
    %p271 = scmp.eq.s32.totalorder %s19, 0
    %p272 = por %p270, %p271
    %p273 = scmp.ne.s32.totalorder %s259, %s260
    %p274 = scmp.eq.s32.totalorder %s20, 1
    %p275 = por %p273, %p274
    %p277 = scmp.ne.s32.totalorder %s260, %s276
    %p278 = scmp.eq.s32.totalorder %s20, 0
    %p279 = por %p277, %p278
    %p280 = scmp.le.s32.totalorder 1, %s14
    %p281 = scmp.lt.s32.totalorder %s14, 3
    %p282 = pnand %p280, %p281
    %p283 = pneg %p282
    // Predicated region
    $region9: #{downsample_with_conv.1} parent=5 // pred_check
      _
    $region10: #{downsample_with_conv.1} parent=5 // pred_check_branch
      %285 = sbr.rel (%p282) target = $region12
    $region11: #{downsample_with_conv.1} parent=5 // pred_region
      %s286 = ssub.s32 %s14, 1
      // Predicated region
      $region13: #{downsample_with_conv.1} parent=11 // pred_check
        %p287 = pneg %p223
      $region14: #{downsample_with_conv.1} parent=11 // pred_check_branch
        %289 = sbr.rel (%p287) target = $region16
      $region15: #{downsample_with_conv.1} parent=11 // pred_region
        _
      $region16: #{downsample_with_conv.1} parent=11 // pred_fallthru
        _
      // Predicated region
      $region17: #{downsample_with_conv.1} parent=11 // pred_check
        %p290 = pneg %p244
      $region18: #{downsample_with_conv.1} parent=11 // pred_check_branch
        %292 = sbr.rel (%p290) target = $region20
      $region19: #{downsample_with_conv.1} parent=11 // pred_region
        _
      $region20: #{downsample_with_conv.1} parent=11 // pred_fallthru
        _
    $region12: #{downsample_with_conv.1} parent=5 // pred_fallthru
      _
    %p293 = scmp.lt.s32.totalorder %s14, 2
    // Predicated region
    $region21: #{downsample_with_conv.1} parent=5 // pred_check
      %p294 = pneg %p293
    $region22: #{downsample_with_conv.1} parent=5 // pred_check_branch
      %296 = sbr.rel (%p294) target = $region24
    $region23: #{downsample_with_conv.1} parent=5 // pred_region
      // Predicated region
      $region25: #{downsample_with_conv.1} parent=23 // pred_check
        %p297 = pneg %p48
      $region26: #{downsample_with_conv.1} parent=23 // pred_check_branch
        %299 = sbr.rel (%p297) target = $region28
      $region27: #{downsample_with_conv.1} parent=23 // pred_region
        %s300 = smul.u32 8, %s22
        %s301 = ssub.s32 9, %s300
        %p302 = scmp.lt.s32.totalorder %s301, 8
        %s303 = scalar_select %p302, %s301, 8
        %s304 = smul.u32 8, %s303
        %s305 = smul.u32 %s304, 2
        %p306 = scmp.lt.s32.totalorder %s21, 1
        %s307 = scalar_select %p306, %s21, 1
        %p308 = scmp.lt.s32.totalorder %s300, 8
        %s309 = scalar_select %p308, %s300, 8
        %s310 = smul.addr %s309, 2
        %s311 = smul.addr %s307, 18
        %s312 = sadd.s32 %s310, %s311
        %s313 = smul.addr %s312, 8
        %s314 = scalar_lea.vmem %s0, %s313
        %s315 = smul.u32 8, %s22
        %s316 = ssub.s32 9, %s315
        %p317 = scmp.lt.s32.totalorder %s316, 8
        %s318 = scalar_select %p317, %s316, 8
        %s319 = smul.u32 8, %s318
        %s320 = smul.u32 %s319, 2
      $region28: #{downsample_with_conv.1} parent=23 // pred_fallthru
        _
      // Predicated region
      $region29: #{downsample_with_conv.1} parent=23 // pred_check
        %p321 = pneg %p80
      $region30: #{downsample_with_conv.1} parent=23 // pred_check_branch
        %323 = sbr.rel (%p321) target = $region32
      $region31: #{downsample_with_conv.1} parent=23 // pred_region
        %s324 = sadd.s32 %s22, 1
        %s325 = smul.u32 %s324, 8
        %p326 = scmp.lt.s32.totalorder %s21, 1
        %s327 = scalar_select %p326, %s21, 1
        %p328 = scmp.lt.s32.totalorder %s325, 8
        %s329 = scalar_select %p328, %s325, 8
        %s330 = smul.addr %s329, 2
        %s331 = smul.addr %s327, 18
        %s332 = sadd.s32 %s330, %s331
        %s333 = smul.addr %s332, 8
        %s334 = scalar_lea.vmem %s1, %s333
        %s335 = sadd.s32 %s22, 1
        %s336 = smul.u32 %s335, 8
      $region32: #{downsample_with_conv.1} parent=23 // pred_fallthru
        _
      // Predicated region
      $region33: #{downsample_with_conv.1} parent=23 // pred_check
        %p337 = pneg %p108
      $region34: #{downsample_with_conv.1} parent=23 // pred_check_branch
        %339 = sbr.rel (%p337) target = $region36
      $region35: #{downsample_with_conv.1} parent=23 // pred_region
        %s340 = smul.u32 8, %s22
        %s341 = ssub.s32 9, %s340
        %p342 = scmp.lt.s32.totalorder %s341, 8
        %s343 = scalar_select %p342, %s341, 8
        %s344 = smul.u32 8, %s343
        %s345 = smul.u32 %s344, 2
        %p346 = scmp.lt.s32.totalorder %s21, 1
        %s347 = scalar_select %p346, %s21, 1
        %p348 = scmp.lt.s32.totalorder %s340, 8
        %s349 = scalar_select %p348, %s340, 8
        %s350 = smul.addr %s349, 2
        %s351 = smul.addr %s347, 18
        %s352 = sadd.s32 %s350, %s351
        %s353 = smul.addr %s352, 8
        %s354 = scalar_lea.vmem %s2, %s353
        %s355 = smul.u32 8, %s22
        %s356 = ssub.s32 9, %s355
        %p357 = scmp.lt.s32.totalorder %s356, 8
        %s358 = scalar_select %p357, %s356, 8
        %s359 = smul.u32 8, %s358
        %s360 = smul.u32 %s359, 2
      $region36: #{downsample_with_conv.1} parent=23 // pred_fallthru
        _
      // Predicated region
      $region37: #{downsample_with_conv.1} parent=23 // pred_check
        %p361 = pneg %p140
      $region38: #{downsample_with_conv.1} parent=23 // pred_check_branch
        %363 = sbr.rel (%p361) target = $region40
      $region39: #{downsample_with_conv.1} parent=23 // pred_region
        %s364 = sadd.s32 %s22, 1
        %s365 = smul.u32 %s364, 8
        %p366 = scmp.lt.s32.totalorder %s21, 1
        %s367 = scalar_select %p366, %s21, 1
        %p368 = scmp.lt.s32.totalorder %s365, 8
        %s369 = scalar_select %p368, %s365, 8
        %s370 = smul.addr %s369, 2
        %s371 = smul.addr %s367, 18
        %s372 = sadd.s32 %s370, %s371
        %s373 = smul.addr %s372, 8
        %s374 = scalar_lea.vmem %s3, %s373
        %s375 = sadd.s32 %s22, 1
        %s376 = smul.u32 %s375, 8
      $region40: #{downsample_with_conv.1} parent=23 // pred_fallthru
        _
      // Predicated region
      $region41: #{downsample_with_conv.1} parent=23 // pred_check
        %p377 = pneg %p168
      $region42: #{downsample_with_conv.1} parent=23 // pred_check_branch
        %379 = sbr.rel (%p377) target = $region44
      $region43: #{downsample_with_conv.1} parent=23 // pred_region
        %s380 = smul.u32 8, %s22
        %s381 = ssub.s32 9, %s380
        %p382 = scmp.lt.s32.totalorder %s381, 8
        %s383 = scalar_select %p382, %s381, 8
        %s384 = smul.u32 8, %s383
        %s385 = smul.u32 %s384, 2
        %p386 = scmp.lt.s32.totalorder %s21, 1
        %s387 = scalar_select %p386, %s21, 1
        %p388 = scmp.lt.s32.totalorder %s380, 8
        %s389 = scalar_select %p388, %s380, 8
        %s390 = smul.addr %s389, 2
        %s391 = smul.addr %s387, 18
        %s392 = sadd.s32 %s390, %s391
        %s393 = smul.addr %s392, 8
        %s394 = scalar_lea.vmem %s4, %s393
        %s395 = smul.u32 8, %s22
        %s396 = ssub.s32 9, %s395
        %p397 = scmp.lt.s32.totalorder %s396, 8
        %s398 = scalar_select %p397, %s396, 8
        %s399 = smul.u32 8, %s398
        %s400 = smul.u32 %s399, 2
      $region44: #{downsample_with_conv.1} parent=23 // pred_fallthru
        _
      // Predicated region
      $region45: #{downsample_with_conv.1} parent=23 // pred_check
        %p401 = pneg %p196
      $region46: #{downsample_with_conv.1} parent=23 // pred_check_branch
        %403 = sbr.rel (%p401) target = $region48
      $region47: #{downsample_with_conv.1} parent=23 // pred_region
        %s404 = smul.u32 8, %s22
        %s405 = ssub.s32 9, %s404
        %p406 = scmp.lt.s32.totalorder %s405, 8
        %s407 = scalar_select %p406, %s405, 8
        %s408 = smul.u32 8, %s407
        %s409 = smul.u32 %s408, 2
        %p410 = scmp.lt.s32.totalorder %s21, 1
        %s411 = scalar_select %p410, %s21, 1
        %p412 = scmp.lt.s32.totalorder %s404, 8
        %s413 = scalar_select %p412, %s404, 8
        %s414 = smul.addr %s413, 2
        %s415 = smul.addr %s411, 18
        %s416 = sadd.s32 %s414, %s415
        %s417 = smul.addr %s416, 8
        %s418 = scalar_lea.vmem %s5, %s417
        %s419 = smul.u32 8, %s22
        %s420 = ssub.s32 9, %s419
        %p421 = scmp.lt.s32.totalorder %s420, 8
        %s422 = scalar_select %p421, %s420, 8
        %s423 = smul.u32 8, %s422
        %s424 = smul.u32 %s423, 2
      $region48: #{downsample_with_conv.1} parent=23 // pred_fallthru
        _
    $region24: #{downsample_with_conv.1} parent=5 // pred_fallthru
      _
    %p425 = scmp.le.s32.totalorder 1, %s14
    %p426 = scmp.lt.s32.totalorder %s14, 3
    %p427 = pnand %p425, %p426
    %p428 = pneg %p427
    // Predicated region
    $region49: #{downsample_with_conv.1} parent=5 // pred_check
      _
    $region50: #{downsample_with_conv.1} parent=5 // pred_check_branch
      %430 = sbr.rel (%p427) target = $region52
    $region51: #{downsample_with_conv.1} parent=5 // pred_region
      %s431 = ssub.s32 %s14, 1
      %s432 = smul.u32 8, %s24
      %s433 = ssub.s32 9, %s432
      %p434 = scmp.lt.s32.totalorder %s433, 8
      %s435 = scalar_select %p434, %s433, 8
      %s436 = smul.u32 8, %s435
      %s437 = smul.u32 %s436, 2
      %p438 = scmp.lt.s32.totalorder %s23, 1
      %s439 = scalar_select %p438, %s23, 1
      %p440 = scmp.lt.s32.totalorder %s432, 8
      %s441 = scalar_select %p440, %s432, 8
      %s442 = smul.addr %s441, 2
      %s443 = smul.addr %s439, 18
      %s444 = sadd.s32 %s442, %s443
      %s445 = smul.addr %s444, 8
      %s446 = scalar_lea.vmem %s0, %s445
      %p447 = pneg %p54
      %p448 = pneg %p51
      %s449 = sadd.s32 %s24, 1
      %s450 = smul.u32 %s449, 8
      %p451 = scmp.lt.s32.totalorder %s23, 1
      %s452 = scalar_select %p451, %s23, 1
      %p453 = scmp.lt.s32.totalorder %s450, 8
      %s454 = scalar_select %p453, %s450, 8
      %s455 = smul.addr %s454, 2
      %s456 = smul.addr %s452, 18
      %s457 = sadd.s32 %s455, %s456
      %s458 = smul.addr %s457, 8
      %s459 = scalar_lea.vmem %s1, %s458
      %p460 = pneg %p86
      %p461 = pneg %p83
      %s462 = smul.u32 8, %s24
      %s463 = ssub.s32 9, %s462
      %p464 = scmp.lt.s32.totalorder %s463, 8
      %s465 = scalar_select %p464, %s463, 8
      %s466 = smul.u32 8, %s465
      %s467 = smul.u32 %s466, 2
      %p468 = scmp.lt.s32.totalorder %s23, 1
      %s469 = scalar_select %p468, %s23, 1
      %p470 = scmp.lt.s32.totalorder %s462, 8
      %s471 = scalar_select %p470, %s462, 8
      %s472 = smul.addr %s471, 2
      %s473 = smul.addr %s469, 18
      %s474 = sadd.s32 %s472, %s473
      %s475 = smul.addr %s474, 8
      %s476 = scalar_lea.vmem %s2, %s475
      %p477 = pneg %p114
      %p478 = pneg %p111
      %s479 = sadd.s32 %s24, 1
      %s480 = smul.u32 %s479, 8
      %p481 = scmp.lt.s32.totalorder %s23, 1
      %s482 = scalar_select %p481, %s23, 1
      %p483 = scmp.lt.s32.totalorder %s480, 8
      %s484 = scalar_select %p483, %s480, 8
      %s485 = smul.addr %s484, 2
      %s486 = smul.addr %s482, 18
      %s487 = sadd.s32 %s485, %s486
      %s488 = smul.addr %s487, 8
      %s489 = scalar_lea.vmem %s3, %s488
      %p490 = pneg %p146
      %p491 = pneg %p143
      %s492 = smul.u32 8, %s24
      %s493 = ssub.s32 9, %s492
      %p494 = scmp.lt.s32.totalorder %s493, 8
      %s495 = scalar_select %p494, %s493, 8
      %s496 = smul.u32 8, %s495
      %s497 = smul.u32 %s496, 2
      %p498 = scmp.lt.s32.totalorder %s23, 1
      %s499 = scalar_select %p498, %s23, 1
      %p500 = scmp.lt.s32.totalorder %s492, 8
      %s501 = scalar_select %p500, %s492, 8
      %s502 = smul.addr %s501, 2
      %s503 = smul.addr %s499, 18
      %s504 = sadd.s32 %s502, %s503
      %s505 = smul.addr %s504, 8
      %s506 = scalar_lea.vmem %s4, %s505
      %p507 = pneg %p174
      %p508 = pneg %p171
      %s509 = smul.u32 8, %s24
      %s510 = ssub.s32 9, %s509
      %p511 = scmp.lt.s32.totalorder %s510, 8
      %s512 = scalar_select %p511, %s510, 8
      %s513 = smul.u32 8, %s512
      %s514 = smul.u32 %s513, 2
      %p515 = scmp.lt.s32.totalorder %s23, 1
      %s516 = scalar_select %p515, %s23, 1
      %p517 = scmp.lt.s32.totalorder %s509, 8
      %s518 = scalar_select %p517, %s509, 8
      %s519 = smul.addr %s518, 2
      %s520 = smul.addr %s516, 18
      %s521 = sadd.s32 %s519, %s520
      %s522 = smul.addr %s521, 8
      %s523 = scalar_lea.vmem %s5, %s522
      %p524 = pneg %p202
      %p525 = pneg %p199
      %p526 = pneg %p223
      %p527 = pneg %p220
      %p528 = pneg %p244
      %p529 = pneg %p241
      %p530 = pneg %p272
      %p531 = pneg %p269
      %p532 = scmp.lt.s32.totalorder %s23, 1
      %s533 = scalar_select %p532, %s23, 1
      %p534 = scmp.lt.s32.totalorder %s24, 0
      %s535 = scalar_select %p534, %s24, 0
      %s536 = smul.addr %s535, 8
      %s537 = smul.addr %s533, 8
      %s538 = sadd.s32 %s536, %s537
      %s539 = smul.addr %s538, 8
      %s540 = scalar_lea.vmem %s8, %s539
      %s541 = smul.u32 8, %s24
      %s542 = ssub.s32 9, %s541
      %p543 = scmp.lt.s32.totalorder %s542, 8
      %s544 = scalar_select %p543, %s542, 8
      %s545 = smul.u32 8, %s544
      %s546 = smul.u32 %s545, 2
      %p547 = scmp.lt.s32.totalorder %s23, 1
      %s548 = scalar_select %p547, %s23, 1
      %p549 = scmp.lt.s32.totalorder %s541, 8
      %s550 = scalar_select %p549, %s541, 8
      %s551 = smul.addr %s550, 2
      %s552 = smul.addr %s548, 18
      %s553 = sadd.s32 %s551, %s552
      %s554 = smul.addr %s553, 8
      %s555 = scalar_lea.vmem %s0, %s554
      %s556 = smul.u32 8, %s24
      %s557 = ssub.s32 9, %s556
      %p558 = scmp.lt.s32.totalorder %s557, 8
      %s559 = scalar_select %p558, %s557, 8
      %s560 = smul.u32 8, %s559
      %s561 = smul.u32 %s560, 2
      %s562 = sadd.s32 %s24, 1
      %s563 = smul.u32 %s562, 8
      %p564 = scmp.lt.s32.totalorder %s23, 1
      %s565 = scalar_select %p564, %s23, 1
      %p566 = scmp.lt.s32.totalorder %s563, 8
      %s567 = scalar_select %p566, %s563, 8
      %s568 = smul.addr %s567, 2
      %s569 = smul.addr %s565, 18
      %s570 = sadd.s32 %s568, %s569
      %s571 = smul.addr %s570, 8
      %s572 = scalar_lea.vmem %s1, %s571
      %s573 = sadd.s32 %s24, 1
      %s574 = smul.u32 %s573, 8
      %s575 = smul.u32 8, %s24
      %s576 = ssub.s32 9, %s575
      %p577 = scmp.lt.s32.totalorder %s576, 8
      %s578 = scalar_select %p577, %s576, 8
      %s579 = smul.u32 8, %s578
      %s580 = smul.u32 %s579, 2
      %p581 = scmp.lt.s32.totalorder %s23, 1
      %s582 = scalar_select %p581, %s23, 1
      %p583 = scmp.lt.s32.totalorder %s575, 8
      %s584 = scalar_select %p583, %s575, 8
      %s585 = smul.addr %s584, 2
      %s586 = smul.addr %s582, 18
      %s587 = sadd.s32 %s585, %s586
      %s588 = smul.addr %s587, 8
      %s589 = scalar_lea.vmem %s2, %s588
      %s590 = smul.u32 8, %s24
      %s591 = ssub.s32 9, %s590
      %p592 = scmp.lt.s32.totalorder %s591, 8
      %s593 = scalar_select %p592, %s591, 8
      %s594 = smul.u32 8, %s593
      %s595 = smul.u32 %s594, 2
      %s596 = sadd.s32 %s24, 1
      %s597 = smul.u32 %s596, 8
      %p598 = scmp.lt.s32.totalorder %s23, 1
      %s599 = scalar_select %p598, %s23, 1
      %p600 = scmp.lt.s32.totalorder %s597, 8
      %s601 = scalar_select %p600, %s597, 8
      %s602 = smul.addr %s601, 2
      %s603 = smul.addr %s599, 18
      %s604 = sadd.s32 %s602, %s603
      %s605 = smul.addr %s604, 8
      %s606 = scalar_lea.vmem %s3, %s605
      %s607 = sadd.s32 %s24, 1
      %s608 = smul.u32 %s607, 8
      %s609 = smul.u32 8, %s24
      %s610 = ssub.s32 9, %s609
      %p611 = scmp.lt.s32.totalorder %s610, 8
      %s612 = scalar_select %p611, %s610, 8
      %s613 = smul.u32 8, %s612
      %s614 = smul.u32 %s613, 2
      %p615 = scmp.lt.s32.totalorder %s23, 1
      %s616 = scalar_select %p615, %s23, 1
      %p617 = scmp.lt.s32.totalorder %s609, 8
      %s618 = scalar_select %p617, %s609, 8
      %s619 = smul.addr %s618, 2
      %s620 = smul.addr %s616, 18
      %s621 = sadd.s32 %s619, %s620
      %s622 = smul.addr %s621, 8
      %s623 = scalar_lea.vmem %s4, %s622
      %s624 = smul.u32 8, %s24
      %s625 = ssub.s32 9, %s624
      %p626 = scmp.lt.s32.totalorder %s625, 8
      %s627 = scalar_select %p626, %s625, 8
      %s628 = smul.u32 8, %s627
      %s629 = smul.u32 %s628, 2
      %s630 = smul.u32 8, %s24
      %s631 = ssub.s32 9, %s630
      %p632 = scmp.lt.s32.totalorder %s631, 8
      %s633 = scalar_select %p632, %s631, 8
      %s634 = smul.u32 8, %s633
      %s635 = smul.u32 %s634, 2
      %p636 = scmp.lt.s32.totalorder %s23, 1
      %s637 = scalar_select %p636, %s23, 1
      %p638 = scmp.lt.s32.totalorder %s630, 8
      %s639 = scalar_select %p638, %s630, 8
      %s640 = smul.addr %s639, 2
      %s641 = smul.addr %s637, 18
      %s642 = sadd.s32 %s640, %s641
      %s643 = smul.addr %s642, 8
      %s644 = scalar_lea.vmem %s5, %s643
      %s645 = smul.u32 8, %s24
      %s646 = ssub.s32 9, %s645
      %p647 = scmp.lt.s32.totalorder %s646, 8
      %s648 = scalar_select %p647, %s646, 8
      %s649 = smul.u32 8, %s648
      %s650 = smul.u32 %s649, 2
      %p651 = scmp.lt.s32.totalorder %s23, 1
      %s652 = scalar_select %p651, %s23, 1
      %p653 = scmp.lt.s32.totalorder %s24, 0
      %s654 = scalar_select %p653, %s24, 0
      %s655 = smul.addr %s654, 8
      %s656 = smul.addr %s652, 8
      %s657 = sadd.s32 %s655, %s656
      %s658 = smul.addr %s657, 8
      %s659 = scalar_lea.vmem %s8, %s658
      %v660 = vld [vmem:[%s555] sm:$0xff]
      %v661 = vld [vmem:[%s555 + $0x8] sm:$0x1]
      %v662 = vld [vmem:[%s555 + $0x10] sm:$0xff]
      %v663 = vld [vmem:[%s555 + $0x18] sm:$0x1]
      %v664 = vld [vmem:[%s555 + $0x20] sm:$0xff]
      %v665 = vld [vmem:[%s555 + $0x28] sm:$0x1]
      %v666 = vld [vmem:[%s555 + $0x30] sm:$0xff]
      %v667 = vld [vmem:[%s555 + $0x38] sm:$0x1]
      %v668 = vld [vmem:[%s555 + $0x40] sm:$0xff]
      %v669 = vld [vmem:[%s555 + $0x48] sm:$0x1]
      %v670 = vld [vmem:[%s555 + $0x50] sm:$0xff]
      %v671 = vld [vmem:[%s555 + $0x58] sm:$0x1]
      %v672 = vld [vmem:[%s555 + $0x60] sm:$0xff]
      %v673 = vld [vmem:[%s555 + $0x68] sm:$0x1]
      %v674 = vld [vmem:[%s555 + $0x70] sm:$0xff]
      %v675 = vld [vmem:[%s555 + $0x78] sm:$0x1]
      %v676 = vld [vmem:[%s572] sm:$0xff]
      %v677 = vld [vmem:[%s572 + $0x8] sm:$0x1]
      %v678 = vld [vmem:[%s589] sm:$0xff]
      %v679 = vld [vmem:[%s589 + $0x10] sm:$0xff]
      %v680 = vld [vmem:[%s589 + $0x20] sm:$0xff]
      %v681 = vld [vmem:[%s589 + $0x30] sm:$0xff]
      %v682 = vld [vmem:[%s589 + $0x40] sm:$0xff]
      %v683 = vld [vmem:[%s589 + $0x50] sm:$0xff]
      %v684 = vld [vmem:[%s589 + $0x60] sm:$0xff]
      %v685 = vld [vmem:[%s589 + $0x70] sm:$0xff]
      %v686 = vld [vmem:[%s606] sm:$0xff]
      %v687 = vld [vmem:[%s623] sm:$0xff]
      %v688 = vld [vmem:[%s623 + $0x8] sm:$0x1]
      %v689 = vld [vmem:[%s623 + $0x10] sm:$0xff]
      %v690 = vld [vmem:[%s623 + $0x18] sm:$0x1]
      %v691 = vld [vmem:[%s623 + $0x20] sm:$0xff]
      %v692 = vld [vmem:[%s623 + $0x28] sm:$0x1]
      %v693 = vld [vmem:[%s623 + $0x30] sm:$0xff]
      %v694 = vld [vmem:[%s623 + $0x38] sm:$0x1]
      %v695 = vld [vmem:[%s623 + $0x40] sm:$0xff]
      %v696 = vld [vmem:[%s623 + $0x48] sm:$0x1]
      %v697 = vld [vmem:[%s623 + $0x50] sm:$0xff]
      %v698 = vld [vmem:[%s623 + $0x58] sm:$0x1]
      %v699 = vld [vmem:[%s623 + $0x60] sm:$0xff]
      %v700 = vld [vmem:[%s623 + $0x68] sm:$0x1]
      %v701 = vld [vmem:[%s623 + $0x70] sm:$0xff]
      %v702 = vld [vmem:[%s623 + $0x78] sm:$0x1]
      %v703 = vld [vmem:[%s644] sm:$0xff]
      %v704 = vld [vmem:[%s644 + $0x10] sm:$0xff]
      %v705 = vld [vmem:[%s644 + $0x20] sm:$0xff]
      %v706 = vld [vmem:[%s644 + $0x30] sm:$0xff]
      %v707 = vld [vmem:[%s644 + $0x40] sm:$0xff]
      %v708 = vld [vmem:[%s644 + $0x50] sm:$0xff]
      %v709 = vld [vmem:[%s644 + $0x60] sm:$0xff]
      %v710 = vld [vmem:[%s644 + $0x70] sm:$0xff]
      %vm711 = vcmask 31744
      %712 = vst.msk [vmem:[#allocation2] sm:$0xff] %vm711, %v660
      %713 = vst.msk [vmem:[#allocation2 + $0x8] sm:$0xff] %vm711, %v662
      %714 = vst.msk [vmem:[#allocation2 + $0x10] sm:$0xff] %vm711, %v664
      %715 = vst.msk [vmem:[#allocation2 + $0x18] sm:$0xff] %vm711, %v666
      %716 = vst.msk [vmem:[#allocation2 + $0x20] sm:$0xff] %vm711, %v668
      %717 = vst.msk [vmem:[#allocation2 + $0x28] sm:$0xff] %vm711, %v670
      %718 = vst.msk [vmem:[#allocation2 + $0x30] sm:$0xff] %vm711, %v672
      %719 = vst.msk [vmem:[#allocation2 + $0x38] sm:$0xff] %vm711, %v674
      %728 = vrot.lane.b32.xlu0 %v678, 4
      %v729 = vpop.permute.xlu0 %728
      %730 = vrot.lane.b32.xlu0 %v679, 4
      %v731 = vpop.permute.xlu0 %730
      %732 = vrot.lane.b32.xlu0 %v680, 4
      %v733 = vpop.permute.xlu0 %732
      %734 = vrot.lane.b32.xlu0 %v681, 4
      %v735 = vpop.permute.xlu0 %734
      %736 = vrot.lane.b32.xlu0 %v682, 4
      %v737 = vpop.permute.xlu0 %736
      %738 = vrot.lane.b32.xlu0 %v683, 4
      %v739 = vpop.permute.xlu0 %738
      %740 = vrot.lane.b32.xlu0 %v684, 4
      %v741 = vpop.permute.xlu0 %740
      %742 = vrot.lane.b32.xlu0 %v685, 4
      %v743 = vpop.permute.xlu0 %742
      %vm752 = vcmask 64544
      %753 = vst.msk [vmem:[#allocation2] sm:$0xff] %vm752, %v729
      %754 = vst.msk [vmem:[#allocation2 + $0x8] sm:$0xff] %vm752, %v731
      %755 = vst.msk [vmem:[#allocation2 + $0x10] sm:$0xff] %vm752, %v733
      %756 = vst.msk [vmem:[#allocation2 + $0x18] sm:$0xff] %vm752, %v735
      %757 = vst.msk [vmem:[#allocation2 + $0x20] sm:$0xff] %vm752, %v737
      %758 = vst.msk [vmem:[#allocation2 + $0x28] sm:$0xff] %vm752, %v739
      %759 = vst.msk [vmem:[#allocation2 + $0x30] sm:$0xff] %vm752, %v741
      %760 = vst.msk [vmem:[#allocation2 + $0x38] sm:$0xff] %vm752, %v743
      %vm777 = vcmask 1046528
      %v778 = vrot.slane %v660, 1
      %v779 = vrot.slane %v661, 1
      %v780 = vsel %vm777, %v778, %v779
      %v781 = vrot.slane %v662, 1
      %v782 = vrot.slane %v663, 1
      %v783 = vsel %vm777, %v781, %v782
      %v784 = vrot.slane %v664, 1
      %v785 = vrot.slane %v665, 1
      %v786 = vsel %vm777, %v784, %v785
      %v787 = vrot.slane %v666, 1
      %v788 = vrot.slane %v667, 1
      %v789 = vsel %vm777, %v787, %v788
      %v790 = vrot.slane %v668, 1
      %v791 = vrot.slane %v669, 1
      %v792 = vsel %vm777, %v790, %v791
      %v793 = vrot.slane %v670, 1
      %v794 = vrot.slane %v671, 1
      %v795 = vsel %vm777, %v793, %v794
      %v796 = vrot.slane %v672, 1
      %v797 = vrot.slane %v673, 1
      %v798 = vsel %vm777, %v796, %v797
      %v799 = vrot.slane %v674, 1
      %v800 = vrot.slane %v675, 1
      %v801 = vsel %vm777, %v799, %v800
      %802 = vrot.lane.b32.xlu0 %v780, 8
      %v803 = vpop.permute.xlu0 %802
      %804 = vrot.lane.b32.xlu0 %v783, 8
      %v805 = vpop.permute.xlu0 %804
      %806 = vrot.lane.b32.xlu0 %v786, 8
      %v807 = vpop.permute.xlu0 %806
      %808 = vrot.lane.b32.xlu0 %v789, 8
      %v809 = vpop.permute.xlu0 %808
      %810 = vrot.lane.b32.xlu0 %v792, 8
      %v811 = vpop.permute.xlu0 %810
      %812 = vrot.lane.b32.xlu0 %v795, 8
      %v813 = vpop.permute.xlu0 %812
      %814 = vrot.lane.b32.xlu0 %v798, 8
      %v815 = vpop.permute.xlu0 %814
      %816 = vrot.lane.b32.xlu0 %v801, 8
      %v817 = vpop.permute.xlu0 %816
      %vm826 = vcmask 97344
      %827 = vst.msk [vmem:[#allocation2] sm:$0xff] %vm826, %v803
      %828 = vst.msk [vmem:[#allocation2 + $0x8] sm:$0xff] %vm826, %v805
      %829 = vst.msk [vmem:[#allocation2 + $0x10] sm:$0xff] %vm826, %v807
      %830 = vst.msk [vmem:[#allocation2 + $0x18] sm:$0xff] %vm826, %v809
      %831 = vst.msk [vmem:[#allocation2 + $0x20] sm:$0xff] %vm826, %v811
      %832 = vst.msk [vmem:[#allocation2 + $0x28] sm:$0xff] %vm826, %v813
      %833 = vst.msk [vmem:[#allocation2 + $0x30] sm:$0xff] %vm826, %v815
      %834 = vst.msk [vmem:[#allocation2 + $0x38] sm:$0xff] %vm826, %v817
      %843 = vrot.lane.b32.xlu0 %v687, 12
      %v844 = vpop.permute.xlu0 %843
      %845 = vrot.lane.b32.xlu0 %v689, 12
      %v846 = vpop.permute.xlu0 %845
      %847 = vrot.lane.b32.xlu0 %v691, 12
      %v848 = vpop.permute.xlu0 %847
      %849 = vrot.lane.b32.xlu0 %v693, 12
      %v850 = vpop.permute.xlu0 %849
      %851 = vrot.lane.b32.xlu0 %v695, 12
      %v852 = vpop.permute.xlu0 %851
      %853 = vrot.lane.b32.xlu0 %v697, 12
      %v854 = vpop.permute.xlu0 %853
      %855 = vrot.lane.b32.xlu0 %v699, 12
      %v856 = vpop.permute.xlu0 %855
      %857 = vrot.lane.b32.xlu0 %v701, 12
      %v858 = vpop.permute.xlu0 %857
      %vm867 = vcmask 130144
      %868 = vst.msk [vmem:[#allocation2] sm:$0xff] %vm867, %v844
      %869 = vst.msk [vmem:[#allocation2 + $0x8] sm:$0xff] %vm867, %v846
      %870 = vst.msk [vmem:[#allocation2 + $0x10] sm:$0xff] %vm867, %v848
      %871 = vst.msk [vmem:[#allocation2 + $0x18] sm:$0xff] %vm867, %v850
      %872 = vst.msk [vmem:[#allocation2 + $0x20] sm:$0xff] %vm867, %v852
      %873 = vst.msk [vmem:[#allocation2 + $0x28] sm:$0xff] %vm867, %v854
      %874 = vst.msk [vmem:[#allocation2 + $0x30] sm:$0xff] %vm867, %v856
      %875 = vst.msk [vmem:[#allocation2 + $0x38] sm:$0xff] %vm867, %v858
      %884 = vrot.lane.b32.xlu0 %v703, 16
      %v885 = vpop.permute.xlu0 %884
      %886 = vrot.lane.b32.xlu0 %v704, 16
      %v887 = vpop.permute.xlu0 %886
      %888 = vrot.lane.b32.xlu0 %v705, 16
      %v889 = vpop.permute.xlu0 %888
      %890 = vrot.lane.b32.xlu0 %v706, 16
      %v891 = vpop.permute.xlu0 %890
      %892 = vrot.lane.b32.xlu0 %v707, 16
      %v893 = vpop.permute.xlu0 %892
      %894 = vrot.lane.b32.xlu0 %v708, 16
      %v895 = vpop.permute.xlu0 %894
      %896 = vrot.lane.b32.xlu0 %v709, 16
      %v897 = vpop.permute.xlu0 %896
      %898 = vrot.lane.b32.xlu0 %v710, 16
      %v899 = vpop.permute.xlu0 %898
      %vm908 = vcmask 162944
      %909 = vst.msk [vmem:[#allocation2] sm:$0xff] %vm908, %v885
      %910 = vst.msk [vmem:[#allocation2 + $0x8] sm:$0xff] %vm908, %v887
      %911 = vst.msk [vmem:[#allocation2 + $0x10] sm:$0xff] %vm908, %v889
      %912 = vst.msk [vmem:[#allocation2 + $0x18] sm:$0xff] %vm908, %v891
      %913 = vst.msk [vmem:[#allocation2 + $0x20] sm:$0xff] %vm908, %v893
      %914 = vst.msk [vmem:[#allocation2 + $0x28] sm:$0xff] %vm908, %v895
      %915 = vst.msk [vmem:[#allocation2 + $0x30] sm:$0xff] %vm908, %v897
      %916 = vst.msk [vmem:[#allocation2 + $0x38] sm:$0xff] %vm908, %v899
      %v925 = vrot.slane %v687, 1
      %v926 = vrot.slane %v688, 1
      %v927 = vsel %vm777, %v925, %v926
      %v928 = vrot.slane %v689, 1
      %v929 = vrot.slane %v690, 1
      %v930 = vsel %vm777, %v928, %v929
      %v931 = vrot.slane %v691, 1
      %v932 = vrot.slane %v692, 1
      %v933 = vsel %vm777, %v931, %v932
      %v934 = vrot.slane %v693, 1
      %v935 = vrot.slane %v694, 1
      %v936 = vsel %vm777, %v934, %v935
      %v937 = vrot.slane %v695, 1
      %v938 = vrot.slane %v696, 1
      %v939 = vsel %vm777, %v937, %v938
      %v940 = vrot.slane %v697, 1
      %v941 = vrot.slane %v698, 1
      %v942 = vsel %vm777, %v940, %v941
      %v943 = vrot.slane %v699, 1
      %v944 = vrot.slane %v700, 1
      %v945 = vsel %vm777, %v943, %v944
      %v946 = vrot.slane %v701, 1
      %v947 = vrot.slane %v702, 1
      %v948 = vsel %vm777, %v946, %v947
      %949 = vrot.lane.b32.xlu0 %v927, 20
      %v950 = vpop.permute.xlu0 %949
      %951 = vrot.lane.b32.xlu0 %v930, 20
      %v952 = vpop.permute.xlu0 %951
      %953 = vrot.lane.b32.xlu0 %v933, 20
      %v954 = vpop.permute.xlu0 %953
      %955 = vrot.lane.b32.xlu0 %v936, 20
      %v956 = vpop.permute.xlu0 %955
      %957 = vrot.lane.b32.xlu0 %v939, 20
      %v958 = vpop.permute.xlu0 %957
      %959 = vrot.lane.b32.xlu0 %v942, 20
      %v960 = vpop.permute.xlu0 %959
      %961 = vrot.lane.b32.xlu0 %v945, 20
      %v962 = vpop.permute.xlu0 %961
      %963 = vrot.lane.b32.xlu0 %v948, 20
      %v964 = vpop.permute.xlu0 %963
      %vm973 = vcmask 195744
      %974 = vst.msk [vmem:[#allocation2] sm:$0xff] %vm973, %v950
      %975 = vst.msk [vmem:[#allocation2 + $0x8] sm:$0xff] %vm973, %v952
      %976 = vst.msk [vmem:[#allocation2 + $0x10] sm:$0xff] %vm973, %v954
      %977 = vst.msk [vmem:[#allocation2 + $0x18] sm:$0xff] %vm973, %v956
      %978 = vst.msk [vmem:[#allocation2 + $0x20] sm:$0xff] %vm973, %v958
      %979 = vst.msk [vmem:[#allocation2 + $0x28] sm:$0xff] %vm973, %v960
      %980 = vst.msk [vmem:[#allocation2 + $0x30] sm:$0xff] %vm973, %v962
      %981 = vst.msk [vmem:[#allocation2 + $0x38] sm:$0xff] %vm973, %v964
      %982 = vrot.lane.b32.xlu0 %v662, 24
      %v983 = vpop.permute.xlu0 %982
      %984 = vrot.lane.b32.xlu0 %v664, 24
      %v985 = vpop.permute.xlu0 %984
      %986 = vrot.lane.b32.xlu0 %v666, 24
      %v987 = vpop.permute.xlu0 %986
      %988 = vrot.lane.b32.xlu0 %v668, 24
      %v989 = vpop.permute.xlu0 %988
      %990 = vrot.lane.b32.xlu0 %v670, 24
      %v991 = vpop.permute.xlu0 %990
      %992 = vrot.lane.b32.xlu0 %v672, 24
      %v993 = vpop.permute.xlu0 %992
      %994 = vrot.lane.b32.xlu0 %v674, 24
      %v995 = vpop.permute.xlu0 %994
      %vm1003 = vcmask 228544
      %1004 = vst.msk [vmem:[#allocation2] sm:$0xff] %vm1003, %v983
      %1005 = vst.msk [vmem:[#allocation2 + $0x8] sm:$0xff] %vm1003, %v985
      %1006 = vst.msk [vmem:[#allocation2 + $0x10] sm:$0xff] %vm1003, %v987
      %1007 = vst.msk [vmem:[#allocation2 + $0x18] sm:$0xff] %vm1003, %v989
      %1008 = vst.msk [vmem:[#allocation2 + $0x20] sm:$0xff] %vm1003, %v991
      %1009 = vst.msk [vmem:[#allocation2 + $0x28] sm:$0xff] %vm1003, %v993
      %1010 = vst.msk [vmem:[#allocation2 + $0x30] sm:$0xff] %vm1003, %v995
      %1012 = vrot.lane.b32.xlu0 %v676, 24
      %v1013 = vpop.permute.xlu0 %1012
      %1015 = vst.msk [vmem:[#allocation2 + $0x38] sm:$0xff] %vm1003, %v1013
      %1016 = vrot.lane.b32.xlu0 %v679, 28
      %v1017 = vpop.permute.xlu0 %1016
      %1018 = vrot.lane.b32.xlu0 %v680, 28
      %v1019 = vpop.permute.xlu0 %1018
      %1020 = vrot.lane.b32.xlu0 %v681, 28
      %v1021 = vpop.permute.xlu0 %1020
      %1022 = vrot.lane.b32.xlu0 %v682, 28
      %v1023 = vpop.permute.xlu0 %1022
      %1024 = vrot.lane.b32.xlu0 %v683, 28
      %v1025 = vpop.permute.xlu0 %1024
      %1026 = vrot.lane.b32.xlu0 %v684, 28
      %v1027 = vpop.permute.xlu0 %1026
      %1028 = vrot.lane.b32.xlu0 %v685, 28
      %v1029 = vpop.permute.xlu0 %1028
      %vm1037 = vcmask 261344
      %1038 = vst.msk [vmem:[#allocation2] sm:$0xff] %vm1037, %v1017
      %1039 = vst.msk [vmem:[#allocation2 + $0x8] sm:$0xff] %vm1037, %v1019
      %1040 = vst.msk [vmem:[#allocation2 + $0x10] sm:$0xff] %vm1037, %v1021
      %1041 = vst.msk [vmem:[#allocation2 + $0x18] sm:$0xff] %vm1037, %v1023
      %1042 = vst.msk [vmem:[#allocation2 + $0x20] sm:$0xff] %vm1037, %v1025
      %1043 = vst.msk [vmem:[#allocation2 + $0x28] sm:$0xff] %vm1037, %v1027
      %1044 = vst.msk [vmem:[#allocation2 + $0x30] sm:$0xff] %vm1037, %v1029
      %1046 = vrot.lane.b32.xlu0 %v686, 28
      %v1047 = vpop.permute.xlu0 %1046
      %1049 = vst.msk [vmem:[#allocation2 + $0x38] sm:$0xff] %vm1037, %v1047
      %1050 = vrot.lane.b32.xlu0 %v783, 32
      %v1051 = vpop.permute.xlu0 %1050
      %1052 = vrot.lane.b32.xlu0 %v786, 32
      %v1053 = vpop.permute.xlu0 %1052
      %1054 = vrot.lane.b32.xlu0 %v789, 32
      %v1055 = vpop.permute.xlu0 %1054
      %1056 = vrot.lane.b32.xlu0 %v792, 32
      %v1057 = vpop.permute.xlu0 %1056
      %1058 = vrot.lane.b32.xlu0 %v795, 32
      %v1059 = vpop.permute.xlu0 %1058
      %1060 = vrot.lane.b32.xlu0 %v798, 32
      %v1061 = vpop.permute.xlu0 %1060
      %1062 = vrot.lane.b32.xlu0 %v801, 32
      %v1063 = vpop.permute.xlu0 %1062
      %vm1071 = vcmask 294144
      %1072 = vst.msk [vmem:[#allocation2] sm:$0xff] %vm1071, %v1051
      %1073 = vst.msk [vmem:[#allocation2 + $0x8] sm:$0xff] %vm1071, %v1053
      %1074 = vst.msk [vmem:[#allocation2 + $0x10] sm:$0xff] %vm1071, %v1055
      %1075 = vst.msk [vmem:[#allocation2 + $0x18] sm:$0xff] %vm1071, %v1057
      %1076 = vst.msk [vmem:[#allocation2 + $0x20] sm:$0xff] %vm1071, %v1059
      %1077 = vst.msk [vmem:[#allocation2 + $0x28] sm:$0xff] %vm1071, %v1061
      %1078 = vst.msk [vmem:[#allocation2 + $0x30] sm:$0xff] %vm1071, %v1063
      %1080 = vrot.lane.b32.xlu0 %v676, 32
      %v1081 = vpop.permute.xlu0 %1080
      %1082 = vrot.lane.b32.xlu0 %v677, 32
      %v1083 = vpop.permute.xlu0 %1082
      %vm1086 = vcmask 294145
      %1087 = vst.msk [vmem:[#allocation2 + $0x37] sm:$0xfe] %vm1086, %v1081
      %vm1088 = vcmask 286976
      %1089 = vst.msk [vmem:[#allocation2 + $0x3f] sm:$0x1] %vm1088, %v1083
      %v1090 = vld [vmem:[#allocation2] sm:$0xff]
      %v1091 = vld [vmem:[#allocation2 + $0x8] sm:$0xff]
      %v1092 = vld [vmem:[#allocation2 + $0x10] sm:$0xff]
      %v1093 = vld [vmem:[#allocation2 + $0x18] sm:$0xff]
      %v1094 = vld [vmem:[#allocation2 + $0x20] sm:$0xff]
      %v1095 = vld [vmem:[#allocation2 + $0x28] sm:$0xff]
      %v1096 = vld [vmem:[#allocation2 + $0x30] sm:$0xff]
      %v1097 = vld [vmem:[#allocation2 + $0x38] sm:$0xff]
      %v1098 = vld [vmem:[%s6] sm:$0xff]
      %v1099 = vld [vmem:[%s6 + $0x8] sm:$0xff]
      %v1100 = vld [vmem:[%s6 + $0x10] sm:$0xff]
      %v1101 = vld [vmem:[%s6 + $0x18] sm:$0xff]
      %v1102 = vld [vmem:[%s6 + $0x20] sm:$0xf]
      %v1103 = vld [vmem:[%s7] sm:$0x1]
      %v1105 = vperm.slane %v1103, 0
      %vm1107 = vcmask 293888
      %v1109 = vsel %vm1107, %v1090, 0
      %v1112 = vsel %vm1107, %v1091, 0
      %v1115 = vsel %vm1107, %v1092, 0
      %v1118 = vsel %vm1107, %v1093, 0
      %v1121 = vsel %vm1107, %v1094, 0
      %v1124 = vsel %vm1107, %v1095, 0
      %v1127 = vsel %vm1107, %v1096, 0
      %v1130 = vsel %vm1107, %v1097, 0
      %vm1132 = vcmask 1043456
      %v1134 = vsel %vm1132, %v1102, 0
      %1136 = vmatpush.msra.mxu0 0.0
      %1137 = vmatpush.msra.mxu0 0.0
      %1138 = vmatpush.msra.mxu0 0.0
      %1139 = vmatpush.msra.mxu0 0.0
      %1140 = vmatpush.msra.mxu0 0.0
      %1141 = vmatpush.msra.mxu0 0.0
      %1142 = vmatpush.msra.mxu0 0.0
      %1143 = vmatpush.msra.mxu0 0.0
      %1144 = vmatpush.msra.mxu0 0.0
      %1145 = vmatpush.msra.mxu0 0.0
      %1146 = vmatpush.msra.mxu0 0.0
      %1147 = vmatpush.msra.mxu0 %v1134
      %1148 = vmatpush.msra.mxu0 %v1101
      %1149 = vmatpush.msra.mxu0 %v1100
      %1150 = vmatpush.msra.mxu0 %v1099
      %1151 = vmatpush.msra.mxu0 %v1098
      %1152 = vmatmul.f32.gmra.mxu0 %v1109
      %v1153 = vpop.f32.mrf.mxu0
      %v1154 = vadd.f32 %v1105, %v1153
      %1155 = vmatmul.f32.gmra.mxu0 %v1112
      %v1156 = vpop.f32.mrf.mxu0
      %v1157 = vadd.f32 %v1105, %v1156
      %1158 = vmatmul.f32.gmra.mxu0 %v1115
      %v1159 = vpop.f32.mrf.mxu0
      %v1160 = vadd.f32 %v1105, %v1159
      %1161 = vmatmul.f32.gmra.mxu0 %v1118
      %v1162 = vpop.f32.mrf.mxu0
      %v1163 = vadd.f32 %v1105, %v1162
      %1164 = vmatmul.f32.gmra.mxu0 %v1121
      %v1165 = vpop.f32.mrf.mxu0
      %v1166 = vadd.f32 %v1105, %v1165
      %1167 = vmatmul.f32.gmra.mxu0 %v1124
      %v1168 = vpop.f32.mrf.mxu0
      %v1169 = vadd.f32 %v1105, %v1168
      %1170 = vmatmul.f32.gmra.mxu0 %v1127
      %v1171 = vpop.f32.mrf.mxu0
      %v1172 = vadd.f32 %v1105, %v1171
      %1173 = vmatmul.f32.gmra.mxu0 %v1130
      %v1174 = vpop.f32.mrf.mxu0
      %v1175 = vadd.f32 %v1105, %v1174
      %1176 = vdwg.mxu0
      %1177 = vst.msk [vmem:[%s659] sm:$0xff] %vm711, %v1154
      %1178 = vst.msk [vmem:[%s659 + $0x8] sm:$0xff] %vm711, %v1157
      %1179 = vst.msk [vmem:[%s659 + $0x10] sm:$0xff] %vm711, %v1160
      %1180 = vst.msk [vmem:[%s659 + $0x18] sm:$0xff] %vm711, %v1163
      %1181 = vst.msk [vmem:[%s659 + $0x20] sm:$0xff] %vm711, %v1166
      %1182 = vst.msk [vmem:[%s659 + $0x28] sm:$0xff] %vm711, %v1169
      %1183 = vst.msk [vmem:[%s659 + $0x30] sm:$0xff] %vm711, %v1172
      %1184 = vst.msk [vmem:[%s659 + $0x38] sm:$0xff] %vm711, %v1175
      %p1185 = scmp.lt.s32.totalorder %s23, 1
      %s1186 = scalar_select %p1185, %s23, 1
      %p1187 = scmp.lt.s32.totalorder %s24, 0
      %s1188 = scalar_select %p1187, %s24, 0
      %s1189 = smul.addr %s1188, 8
      %s1190 = smul.addr %s1186, 8
      %s1191 = sadd.s32 %s1189, %s1190
      %s1192 = smul.addr %s1191, 8
      %s1193 = scalar_lea.vmem %s8, %s1192
      // Predicated region
      $region53: #{downsample_with_conv.1} parent=51 // pred_check
        %p1194 = pneg %p269
      $region54: #{downsample_with_conv.1} parent=51 // pred_check_branch
        %1196 = sbr.rel (%p1194) target = $region56
      $region55: #{downsample_with_conv.1} parent=51 // pred_region
        _
      $region56: #{downsample_with_conv.1} parent=51 // pred_fallthru
        _
    $region52: #{downsample_with_conv.1} parent=5 // pred_fallthru
      _
    %p1197 = scmp.le.s32.totalorder 2, %s14
    // Predicated region
    $region57: #{downsample_with_conv.1} parent=5 // pred_check
      %p1198 = pneg %p1197
    $region58: #{downsample_with_conv.1} parent=5 // pred_check_branch
      %1200 = sbr.rel (%p1198) target = $region60
    $region59: #{downsample_with_conv.1} parent=5 // pred_region
      %s1201 = ssub.s32 %s14, 2
      // Predicated region
      $region61: #{downsample_with_conv.1} parent=59 // pred_check
        %p1202 = pneg %p275
      $region62: #{downsample_with_conv.1} parent=59 // pred_check_branch
        %1204 = sbr.rel (%p1202) target = $region64
      $region63: #{downsample_with_conv.1} parent=59 // pred_region
        %p1205 = scmp.lt.s32.totalorder %s25, 1
        %s1206 = scalar_select %p1205, %s25, 1
        %p1207 = scmp.lt.s32.totalorder %s26, 0
        %s1208 = scalar_select %p1207, %s26, 0
        %s1209 = smul.addr %s1208, 8
        %s1210 = smul.addr %s1206, 8
        %s1211 = sadd.s32 %s1209, %s1210
        %s1212 = smul.addr %s1211, 8
        %s1213 = scalar_lea.vmem %s8, %s1212
      $region64: #{downsample_with_conv.1} parent=59 // pred_fallthru
        _
    $region60: #{downsample_with_conv.1} parent=5 // pred_fallthru
      _
  $region6: #{downsample_with_conv.1} parent=0 // loop_footer
    %s18 = sadd.s32 1, %s14
  $region7: #{downsample_with_conv.1} parent=0 // loop_footer_branch
    %13 = sbr.rel target = $region3
  $region8: #{downsample_with_conv.1} parent=0 // loop_exit
    _

</llo_original>
